<compile_context>
chip_gen: v6e
topology: v6e:2x2x1
jax: 0.10.0
libtpu: 0.0.40
codegen_flags: <defaults>
</compile_context>

<pallas_src>
import functools

import numpy as np
import jax
import jax.numpy as jnp
from jax import lax
from jax.experimental import pallas as pl
from jax.experimental.pallas import tpu as pltpu


# ----------------------------- Pallas kernel --------------------------------

def _conv3x3_s2_relu_kernel(x_ref, w_ref, b_ref, o_ref, *, wo, tm, m_blocks):
    """One (batch, M-tile, Cout-tile) grid step of a 3x3/stride-2/pad-1 conv+bias+ReLU.

    x_ref: (1, 6, (ho+1)*wo, C) bf16 — stride-2 slabs of the padded NHWC input.
           Slab j = (ki%2)*3 + kj holds padded rows 2a+(ki%2) and cols 2w+kj,
           flattened as m = a*wo + w.  Tap (ki,kj) for flattened output rows
           [m0, m0+tm) is the contiguous window [m0 + (ki//2)*wo, ... + tm) of
           slab j, so every matmul operand is a plain 2D slice.
    w_ref: (9, C, TN) bf16 — per-tap weight slab for this Cout tile.
    b_ref: (1, TN)    f32  — bias slice.
    o_ref: (1, TM, TN) bf16 — flattened NHWC output tile (lane-dense TN).
    """
    if m_blocks == 1:
        m0 = 0                                           # static when untiled
    else:
        hint = tm & -tm                                  # largest pow2 dividing tm
        m0 = pl.multiple_of(pl.program_id(1) * tm, hint)

    acc = None
    for ki in range(3):
        qi, ri = divmod(ki, 2)                 # padded row = 2*(out_row + qi) + ri
        for kj in range(3):
            j = ri * 3 + kj
            lhs = x_ref[0, j, pl.ds(m0 + qi * wo, tm), :]           # (tm, C) bf16
            d = jnp.dot(lhs, w_ref[ki * 3 + kj],
                        preferred_element_type=jnp.float32)          # MXU, f32 acc
            acc = d if acc is None else acc + d                      # first tap inits
    o_ref[0] = jnp.maximum(acc + b_ref[...], 0.0).astype(o_ref.dtype)


# ----------------------------- wrappers --------------------------------------

def _tpu_generation():
    try:
        kind = jax.devices()[0].device_kind.lower()
    except Exception:
        return 0
    for g in (7, 6, 5, 4):
        if "v%d" % g in kind:
            return g
    return 0


def conv3x3_s2_relu_pallas(x_nchw, w, b, *, out_dtype=jnp.bfloat16):
    """Strided 3x3 conv + bias + ReLU.  x: (B,C,H,W) f32 -> (B,Ho,Wo,Cout) NHWC bf16."""
    B, C, H, W = x_nchw.shape
    Cout = w.shape[0]
    assert w.shape == (Cout, C, 3, 3)
    # TODO(synk): generalize slab construction to odd H/W (Ho=(H+1)//2 like the
    # PyTorch conv); the stand-in stem only needs even spatial dims.
    assert H % 2 == 0 and W % 2 == 0, "stand-in stem expects even spatial dims"
    Ho, Wo = H // 2, W // 2
    Hq = Ho + 1                                   # quotient rows of the padded input
    M = Ho * Wo

    gen = _tpu_generation()
    # Output tile width: 256 fills the 2x256^2 MXU on v6e/v7x; 128 on v5e (4x128^2)
    # and for small Cout (so padding does not double the stored/computed width).
    TN = 128 if (Cout <= 128 or gen == 5) else 256
    # M tiling: keep the f32 accumulator <= (256, TN), i.e. well under 64 vregs.
    TM_CAP = 256
    if M <= TM_CAP:
        TM = M
    else:
        TM = 0
        for cand in range(TM_CAP, 7, -8):          # multiples of 8 (sublane)
            if M % cand == 0:
                TM = cand
                break
        if TM == 0:
            TM = M   # TODO(synk): pad the M axis when Ho*Wo has no tile-able divisor
    m_blocks = M // TM

    # ---- layout glue: cast to bf16 FIRST, then transpose/pad/strided-slab build
    # (pure data movement at half the HBM bytes of the old f32 path; six slabs
    # together are ~0.75x the f32 input size, NOT a 9x im2col).
    x_bf16 = x_nchw.astype(jnp.bfloat16)
    x_nhwc = jnp.transpose(x_bf16, (0, 2, 3, 1))                    # (B,H,W,C)
    xp = jnp.pad(x_nhwc, ((0, 0), (1, 1), (1, 1), (0, 0)))          # (B,H+2,W+2,C)
    slabs = []
    for ri in range(2):
        rows = xp[:, ri::2, :, :]                                   # (B,Hq,W+2,C)
        for kj in range(3):
            cols = rows[:, :, kj:kj + 2 * Wo:2, :]                  # (B,Hq,Wo,C)
            slabs.append(cols.reshape(B, Hq * Wo, C))
    xs6 = jnp.stack(slabs, axis=1)                                  # (B,6,Hq*Wo,C) bf16

    # weights as 9 per-tap (C, Cout_pad) slabs, bf16; Cout padded to a multiple of
    # TN so output stores are lane-dense (unmasked vst).
    cout_pad = ((Cout + TN - 1) // TN) * TN
    w_taps = jnp.transpose(w, (2, 3, 1, 0)).reshape(9, C, Cout)     # (tap,Cin,Cout)
    w_taps = jnp.pad(w_taps, ((0, 0), (0, 0), (0, cout_pad - Cout))).astype(jnp.bfloat16)
    b2 = jnp.pad(b, (0, cout_pad - Cout)).reshape(1, cout_pad).astype(jnp.float32)
    n_blocks = cout_pad // TN

    # batch leading (megacore shards B, not Cout); Cout innermost so the resident
    # slab is reused across all (M, Cout) tiles of a batch element.
    grid = (B, m_blocks, n_blocks)

    if gen >= 7:
        vmem_limit = 48 * 1024 * 1024      # v7x: 64 MiB physical per TC
    elif gen == 6:
        vmem_limit = 96 * 1024 * 1024      # v6e: 128 MiB physical
    else:
        vmem_limit = 64 * 1024 * 1024      # v5e / unknown: 128 MiB physical

    out_itemsize = jnp.dtype(out_dtype).itemsize
    flops = 2 * B * M * (9 * C) * cout_pad
    bytes_accessed = (xs6.size * 2                                   # slab: once per batch
                      + (w_taps.size * 2 + b2.size * 4) * B * m_blocks
                      + B * M * cout_pad * out_itemsize)

    kernel = functools.partial(_conv3x3_s2_relu_kernel, wo=Wo, tm=TM,
                               m_blocks=m_blocks)
    out = pl.pallas_call(
        kernel,
        out_shape=jax.ShapeDtypeStruct((B, M, cout_pad), out_dtype),
        grid=grid,
        in_specs=[
            # Slab index_map constant across (mi, ni) -> DMA'd once per batch,
            # resident while all M/Cout tiles of that batch element are computed.
            # TODO(synk): for v7x at layer4 scale, block the slab along the Hq*Wo
            # axis (halo of +Wo rows) via memory_space=pl.ANY + make_async_copy so
            # 2x(slab block)+2x(weights)+2x(out block) fits the 64 MiB/TC VMEM.
            pl.BlockSpec((1, 6, Hq * Wo, C), lambda bi, mi, ni: (bi, 0, 0, 0)),
            # NOTE: if weight re-DMA shows as exposed on v5e, add
            # pipeline_mode=pl.Buffered(3) to this spec.
            pl.BlockSpec((9, C, TN),         lambda bi, mi, ni: (0, 0, ni)),
            pl.BlockSpec((1, TN),            lambda bi, mi, ni: (0, ni)),
        ],
        out_specs=pl.BlockSpec((1, TM, TN), lambda bi, mi, ni: (bi, mi, ni)),
        compiler_params=pltpu.CompilerParams(
            dimension_semantics=("parallel", "parallel", "arbitrary"),
            vmem_limit_bytes=vmem_limit),
        cost_estimate=pl.CostEstimate(flops=flops, transcendentals=0,
                                      bytes_accessed=bytes_accessed),
    )(xs6, w_taps, b2)

    out = out.reshape(B, Ho, Wo, cout_pad)        # free: identical row-major layout
    if cout_pad != Cout:
        out = out[..., :Cout]
    return out                                     # NHWC (DETR flattens right after)
    # TODO(synk): for stem-like Cin <= 64 used standalone, fold the 9 taps into a
    # single K=9*C contraction so the MXU contraction/lane dim is >= 128.


def mask_nearest_resize(mask_bool, out_hw):
    """F.interpolate(m[None].float(), size=out_hw, mode='nearest').to(bool)[0].

    Nearest-neighbour resize is pure data movement (no FLOPs); it is an
    integer-exact strided slice / constant-index gather in XLA, not MXU work.
    """
    B, H, W = mask_bool.shape
    Ho, Wo = out_hw
    if H % Ho == 0 and W % Wo == 0:                       # integer scale: strided slice
        return mask_bool[:, :: H // Ho, :: W // Wo]
    ih = np.asarray((np.arange(Ho) * H) // Ho, np.int32)  # integer math: bit-exact
    iw = np.asarray((np.arange(Wo) * W) // Wo, np.int32)
    return mask_bool[:, ih][:, :, iw]


class BackboneBasePallas:
    """Pallas re-implementation of BackboneBase.forward (return_interm_layers=False).

    # TODO(synk): the injected ResNet backbone / IntermediateLayerGetter is an
    # arbitrary external nn.Module; it is stood in for by one strided conv+ReLU
    # ('layer4' -> key '0').  requires_grad_ freezing has no forward-pass effect.
    """

    def __init__(self, in_channels: int, num_channels: int, key):
        self.num_channels = num_channels
        kw, kb = jax.random.split(key)
        fan_in = in_channels * 3 * 3
        self.w = jax.random.normal(kw, (num_channels, in_channels, 3, 3),
                                   jnp.float32) * (1.0 / np.sqrt(fan_in))
        self.b = jax.random.normal(kb, (num_channels,), jnp.float32) * 0.01

    def __call__(self, tensors, mask):
        # self.body(tensors) -> {'0': feature map}; returned NHWC (B,Ho,Wo,C), bf16.
        x = conv3x3_s2_relu_pallas(tensors, self.w, self.b)
        m = mask_nearest_resize(mask, (x.shape[1], x.shape[2]))
        return {"0": (x, m)}    # NestedTensor(x, mask)


# ----------------------------- main -------------------------------------------

if __name__ == "__main__":
    key = jax.random.PRNGKey(0)
    k_x, k_p = jax.random.split(key)

    B, C, H, W = 2, 4, 16, 16
    num_channels = 128        # lane-dense stand-in for layer4 channels (512/2048)

    tensors = jax.random.normal(k_x, (B, C, H, W), jnp.float32)
    # padding mask (True = padded), different valid region per batch element
    mask = jnp.zeros((B, H, W), jnp.bool_)
    mask = mask.at[0, 12:, :].set(True)
    mask = mask.at[1, :, 10:].set(True)

    model = BackboneBasePallas(C, num_channels, k_p)
    out = model(tensors, mask)
    x_out, m_out = out["0"]
    jax.block_until_ready((x_out, m_out))

    # reference (plain XLA) with the same bf16 operand rounding, f32 accumulation
    xq = tensors.astype(jnp.bfloat16).astype(jnp.float32)
    wq = model.w.astype(jnp.bfloat16).astype(jnp.float32)
    y = lax.conv_general_dilated(xq, wq, window_strides=(2, 2),
                                 padding=((1, 1), (1, 1)),
                                 dimension_numbers=("NCHW", "OIHW", "NHWC"))
    y_ref = jnp.maximum(y + model.b[None, None, None, :], 0.0)
    m_ref = mask[:, ::2, ::2]                      # nearest downsample by 2

    assert x_out.shape == (B, H // 2, W // 2, num_channels)
    assert x_out.dtype == jnp.bfloat16
    assert m_out.shape == (B, H // 2, W // 2) and m_out.dtype == jnp.bool_
    x_f32 = x_out.astype(jnp.float32)
    err = float(jnp.max(jnp.abs(x_f32 - y_ref)))
    assert jnp.allclose(x_f32, y_ref, atol=2e-2, rtol=2e-2), err
    assert jnp.array_equal(m_out, m_ref)

    print("KERNEL_OK")
</pallas_src>

<mosaic_0001>
module attributes {stable_mosaic.version = 11 : i64} {
  func.func @_conv3x3_s2_relu_kernel(%arg0: i32, %arg1: i32, %arg2: i32, %arg3: memref<1x6x72x4xbf16, #tpu.memory_space<vmem>>, %arg4: memref<9x4x128xbf16, #tpu.memory_space<vmem>>, %arg5: memref<1x128xf32, #tpu.memory_space<vmem>>, %arg6: memref<1x64x128xbf16, #tpu.memory_space<vmem>>) attributes {dimension_semantics = [#tpu.dimension_semantics<parallel>, #tpu.dimension_semantics<parallel>, #tpu.dimension_semantics<arbitrary>], iteration_bounds = array<i64: 2, 1, 1>, scalar_prefetch = 0 : i64, scratch_operands = 0 : i64, tpu.core_type = #tpu.core_type<tc>, window_params = [{transform_indices = @transform_0, window_bounds = array<i64: 1, 6, 72, 4>}, {transform_indices = @transform_1, window_bounds = array<i64: 9, 4, 128>}, {transform_indices = @transform_2, window_bounds = array<i64: 1, 128>}, {transform_indices = @transform_3, window_bounds = array<i64: 1, 64, 128>}]} {
    %c0 = arith.constant 0 : index
    %c0_0 = arith.constant 0 : index
    %c0_1 = arith.constant 0 : index
    %c0_2 = arith.constant 0 : index
    %0 = vector.load %arg3[%c0, %c0_0, %c0_1, %c0_2] : memref<1x6x72x4xbf16, #tpu.memory_space<vmem>>, vector<1x1x64x4xbf16>
    %1 = vector.shape_cast %0 : vector<1x1x64x4xbf16> to vector<64x4xbf16>
    %c0_3 = arith.constant 0 : index
    %c0_4 = arith.constant 0 : index
    %c0_5 = arith.constant 0 : index
    %2 = vector.load %arg4[%c0_3, %c0_4, %c0_5] : memref<9x4x128xbf16, #tpu.memory_space<vmem>>, vector<1x4x128xbf16>
    %3 = vector.shape_cast %2 : vector<1x4x128xbf16> to vector<4x128xbf16>
    %cst = arith.constant dense<0.000000e+00> : vector<64x128xf32>
    %4 = tpu.matmul %1, %3, %cst {dimension_numbers = #tpu.dot_dimension_numbers<[1], [0], [0], [1], [0, 0, 1, 1], [], []>} : vector<64x4xbf16>, vector<4x128xbf16>, vector<64x128xf32> -> vector<64x128xf32>
    %c0_6 = arith.constant 0 : index
    %c1 = arith.constant 1 : index
    %c0_7 = arith.constant 0 : index
    %c0_8 = arith.constant 0 : index
    %5 = vector.load %arg3[%c0_6, %c1, %c0_7, %c0_8] : memref<1x6x72x4xbf16, #tpu.memory_space<vmem>>, vector<1x1x64x4xbf16>
    %6 = vector.shape_cast %5 : vector<1x1x64x4xbf16> to vector<64x4xbf16>
    %c1_9 = arith.constant 1 : index
    %c0_10 = arith.constant 0 : index
    %c0_11 = arith.constant 0 : index
    %7 = vector.load %arg4[%c1_9, %c0_10, %c0_11] : memref<9x4x128xbf16, #tpu.memory_space<vmem>>, vector<1x4x128xbf16>
    %8 = vector.shape_cast %7 : vector<1x4x128xbf16> to vector<4x128xbf16>
    %cst_12 = arith.constant dense<0.000000e+00> : vector<64x128xf32>
    %9 = tpu.matmul %6, %8, %cst_12 {dimension_numbers = #tpu.dot_dimension_numbers<[1], [0], [0], [1], [0, 0, 1, 1], [], []>} : vector<64x4xbf16>, vector<4x128xbf16>, vector<64x128xf32> -> vector<64x128xf32>
    %10 = arith.addf %4, %9 : vector<64x128xf32>
    %c0_13 = arith.constant 0 : index
    %c2 = arith.constant 2 : index
    %c0_14 = arith.constant 0 : index
    %c0_15 = arith.constant 0 : index
    %11 = vector.load %arg3[%c0_13, %c2, %c0_14, %c0_15] : memref<1x6x72x4xbf16, #tpu.memory_space<vmem>>, vector<1x1x64x4xbf16>
    %12 = vector.shape_cast %11 : vector<1x1x64x4xbf16> to vector<64x4xbf16>
    %c2_16 = arith.constant 2 : index
    %c0_17 = arith.constant 0 : index
    %c0_18 = arith.constant 0 : index
    %13 = vector.load %arg4[%c2_16, %c0_17, %c0_18] : memref<9x4x128xbf16, #tpu.memory_space<vmem>>, vector<1x4x128xbf16>
    %14 = vector.shape_cast %13 : vector<1x4x128xbf16> to vector<4x128xbf16>
    %cst_19 = arith.constant dense<0.000000e+00> : vector<64x128xf32>
    %15 = tpu.matmul %12, %14, %cst_19 {dimension_numbers = #tpu.dot_dimension_numbers<[1], [0], [0], [1], [0, 0, 1, 1], [], []>} : vector<64x4xbf16>, vector<4x128xbf16>, vector<64x128xf32> -> vector<64x128xf32>
    %16 = arith.addf %10, %15 : vector<64x128xf32>
    %c0_20 = arith.constant 0 : index
    %c3 = arith.constant 3 : index
    %c0_21 = arith.constant 0 : index
    %c0_22 = arith.constant 0 : index
    %17 = vector.load %arg3[%c0_20, %c3, %c0_21, %c0_22] : memref<1x6x72x4xbf16, #tpu.memory_space<vmem>>, vector<1x1x64x4xbf16>
    %18 = vector.shape_cast %17 : vector<1x1x64x4xbf16> to vector<64x4xbf16>
    %c3_23 = arith.constant 3 : index
    %c0_24 = arith.constant 0 : index
    %c0_25 = arith.constant 0 : index
    %19 = vector.load %arg4[%c3_23, %c0_24, %c0_25] : memref<9x4x128xbf16, #tpu.memory_space<vmem>>, vector<1x4x128xbf16>
    %20 = vector.shape_cast %19 : vector<1x4x128xbf16> to vector<4x128xbf16>
    %cst_26 = arith.constant dense<0.000000e+00> : vector<64x128xf32>
    %21 = tpu.matmul %18, %20, %cst_26 {dimension_numbers = #tpu.dot_dimension_numbers<[1], [0], [0], [1], [0, 0, 1, 1], [], []>} : vector<64x4xbf16>, vector<4x128xbf16>, vector<64x128xf32> -> vector<64x128xf32>
    %22 = arith.addf %16, %21 : vector<64x128xf32>
    %c0_27 = arith.constant 0 : index
    %c4 = arith.constant 4 : index
    %c0_28 = arith.constant 0 : index
    %c0_29 = arith.constant 0 : index
    %23 = vector.load %arg3[%c0_27, %c4, %c0_28, %c0_29] : memref<1x6x72x4xbf16, #tpu.memory_space<vmem>>, vector<1x1x64x4xbf16>
    %24 = vector.shape_cast %23 : vector<1x1x64x4xbf16> to vector<64x4xbf16>
    %c4_30 = arith.constant 4 : index
    %c0_31 = arith.constant 0 : index
    %c0_32 = arith.constant 0 : index
    %25 = vector.load %arg4[%c4_30, %c0_31, %c0_32] : memref<9x4x128xbf16, #tpu.memory_space<vmem>>, vector<1x4x128xbf16>
    %26 = vector.shape_cast %25 : vector<1x4x128xbf16> to vector<4x128xbf16>
    %cst_33 = arith.constant dense<0.000000e+00> : vector<64x128xf32>
    %27 = tpu.matmul %24, %26, %cst_33 {dimension_numbers = #tpu.dot_dimension_numbers<[1], [0], [0], [1], [0, 0, 1, 1], [], []>} : vector<64x4xbf16>, vector<4x128xbf16>, vector<64x128xf32> -> vector<64x128xf32>
    %28 = arith.addf %22, %27 : vector<64x128xf32>
    %c0_34 = arith.constant 0 : index
    %c5 = arith.constant 5 : index
    %c0_35 = arith.constant 0 : index
    %c0_36 = arith.constant 0 : index
    %29 = vector.load %arg3[%c0_34, %c5, %c0_35, %c0_36] : memref<1x6x72x4xbf16, #tpu.memory_space<vmem>>, vector<1x1x64x4xbf16>
    %30 = vector.shape_cast %29 : vector<1x1x64x4xbf16> to vector<64x4xbf16>
    %c5_37 = arith.constant 5 : index
    %c0_38 = arith.constant 0 : index
    %c0_39 = arith.constant 0 : index
    %31 = vector.load %arg4[%c5_37, %c0_38, %c0_39] : memref<9x4x128xbf16, #tpu.memory_space<vmem>>, vector<1x4x128xbf16>
    %32 = vector.shape_cast %31 : vector<1x4x128xbf16> to vector<4x128xbf16>
    %cst_40 = arith.constant dense<0.000000e+00> : vector<64x128xf32>
    %33 = tpu.matmul %30, %32, %cst_40 {dimension_numbers = #tpu.dot_dimension_numbers<[1], [0], [0], [1], [0, 0, 1, 1], [], []>} : vector<64x4xbf16>, vector<4x128xbf16>, vector<64x128xf32> -> vector<64x128xf32>
    %34 = arith.addf %28, %33 : vector<64x128xf32>
    %c0_41 = arith.constant 0 : index
    %c0_42 = arith.constant 0 : index
    %c8 = arith.constant 8 : index
    %c0_43 = arith.constant 0 : index
    %35 = vector.load %arg3[%c0_41, %c0_42, %c8, %c0_43] : memref<1x6x72x4xbf16, #tpu.memory_space<vmem>>, vector<1x1x64x4xbf16>
    %36 = vector.shape_cast %35 : vector<1x1x64x4xbf16> to vector<64x4xbf16>
    %c6 = arith.constant 6 : index
    %c0_44 = arith.constant 0 : index
    %c0_45 = arith.constant 0 : index
    %37 = vector.load %arg4[%c6, %c0_44, %c0_45] : memref<9x4x128xbf16, #tpu.memory_space<vmem>>, vector<1x4x128xbf16>
    %38 = vector.shape_cast %37 : vector<1x4x128xbf16> to vector<4x128xbf16>
    %cst_46 = arith.constant dense<0.000000e+00> : vector<64x128xf32>
    %39 = tpu.matmul %36, %38, %cst_46 {dimension_numbers = #tpu.dot_dimension_numbers<[1], [0], [0], [1], [0, 0, 1, 1], [], []>} : vector<64x4xbf16>, vector<4x128xbf16>, vector<64x128xf32> -> vector<64x128xf32>
    %40 = arith.addf %34, %39 : vector<64x128xf32>
    %c0_47 = arith.constant 0 : index
    %c1_48 = arith.constant 1 : index
    %c8_49 = arith.constant 8 : index
    %c0_50 = arith.constant 0 : index
    %41 = vector.load %arg3[%c0_47, %c1_48, %c8_49, %c0_50] : memref<1x6x72x4xbf16, #tpu.memory_space<vmem>>, vector<1x1x64x4xbf16>
    %42 = vector.shape_cast %41 : vector<1x1x64x4xbf16> to vector<64x4xbf16>
    %c7 = arith.constant 7 : index
    %c0_51 = arith.constant 0 : index
    %c0_52 = arith.constant 0 : index
    %43 = vector.load %arg4[%c7, %c0_51, %c0_52] : memref<9x4x128xbf16, #tpu.memory_space<vmem>>, vector<1x4x128xbf16>
    %44 = vector.shape_cast %43 : vector<1x4x128xbf16> to vector<4x128xbf16>
    %cst_53 = arith.constant dense<0.000000e+00> : vector<64x128xf32>
    %45 = tpu.matmul %42, %44, %cst_53 {dimension_numbers = #tpu.dot_dimension_numbers<[1], [0], [0], [1], [0, 0, 1, 1], [], []>} : vector<64x4xbf16>, vector<4x128xbf16>, vector<64x128xf32> -> vector<64x128xf32>
    %46 = arith.addf %40, %45 : vector<64x128xf32>
    %c0_54 = arith.constant 0 : index
    %c2_55 = arith.constant 2 : index
    %c8_56 = arith.constant 8 : index
    %c0_57 = arith.constant 0 : index
    %47 = vector.load %arg3[%c0_54, %c2_55, %c8_56, %c0_57] : memref<1x6x72x4xbf16, #tpu.memory_space<vmem>>, vector<1x1x64x4xbf16>
    %48 = vector.shape_cast %47 : vector<1x1x64x4xbf16> to vector<64x4xbf16>
    %c8_58 = arith.constant 8 : index
    %c0_59 = arith.constant 0 : index
    %c0_60 = arith.constant 0 : index
    %49 = vector.load %arg4[%c8_58, %c0_59, %c0_60] : memref<9x4x128xbf16, #tpu.memory_space<vmem>>, vector<1x4x128xbf16>
    %50 = vector.shape_cast %49 : vector<1x4x128xbf16> to vector<4x128xbf16>
    %cst_61 = arith.constant dense<0.000000e+00> : vector<64x128xf32>
    %51 = tpu.matmul %48, %50, %cst_61 {dimension_numbers = #tpu.dot_dimension_numbers<[1], [0], [0], [1], [0, 0, 1, 1], [], []>} : vector<64x4xbf16>, vector<4x128xbf16>, vector<64x128xf32> -> vector<64x128xf32>
    %52 = arith.addf %46, %51 : vector<64x128xf32>
    %c0_62 = arith.constant 0 : index
    %c0_63 = arith.constant 0 : index
    %53 = vector.load %arg5[%c0_62, %c0_63] : memref<1x128xf32, #tpu.memory_space<vmem>>, vector<1x128xf32>
    %54 = vector.broadcast %53 : vector<1x128xf32> to vector<64x128xf32>
    %55 = arith.addf %52, %54 : vector<64x128xf32>
    %cst_64 = arith.constant 0.000000e+00 : f32
    %56 = vector.broadcast %cst_64 : f32 to vector<64x128xf32>
    %57 = arith.maximumf %55, %56 : vector<64x128xf32>
    %58 = arith.truncf %57 : vector<64x128xf32> to vector<64x128xbf16>
    %c0_65 = arith.constant 0 : index
    %c0_66 = arith.constant 0 : index
    %c0_67 = arith.constant 0 : index
    %59 = vector.load %arg6[%c0_65, %c0_66, %c0_67] : memref<1x64x128xbf16, #tpu.memory_space<vmem>>, vector<1x64x128xbf16>
    %60 = vector.shape_cast %59 : vector<1x64x128xbf16> to vector<64x128xbf16>
    %61 = vector.shape_cast %58 : vector<64x128xbf16> to vector<1x64x128xbf16>
    tpu.vector_store %arg6[%c0_65, %c0_66, %c0_67], %61 {strides = array<i32>} : memref<1x64x128xbf16, #tpu.memory_space<vmem>>, vector<1x64x128xbf16>,
    return
  }
  func.func @transform_0(%arg0: i32, %arg1: i32, %arg2: i32) -> (i32, i32, i32, i32) {
    %c0_i32 = arith.constant 0 : i32
    %c0_i32_0 = arith.constant 0 : i32
    %c0_i32_1 = arith.constant 0 : i32
    %c0_i32_2 = arith.constant 0 : i32
    return %arg0, %c0_i32, %c0_i32_0, %c0_i32_1 : i32, i32, i32, i32
  }
  func.func @transform_1(%arg0: i32, %arg1: i32, %arg2: i32) -> (i32, i32, i32) {
    %c0_i32 = arith.constant 0 : i32
    %c0_i32_0 = arith.constant 0 : i32
    %c0_i32_1 = arith.constant 0 : i32
    return %c0_i32, %c0_i32_0, %arg2 : i32, i32, i32
  }
  func.func @transform_2(%arg0: i32, %arg1: i32, %arg2: i32) -> (i32, i32) {
    %c0_i32 = arith.constant 0 : i32
    %c0_i32_0 = arith.constant 0 : i32
    return %c0_i32, %arg2 : i32, i32
  }
  func.func @transform_3(%arg0: i32, %arg1: i32, %arg2: i32) -> (i32, i32, i32) {
    %c0_i32 = arith.constant 0 : i32
    return %arg0, %arg1, %arg2 : i32, i32, i32
  }
}

</mosaic_0001>

<llo_original>
// kernel: tpu_custom_call.1
$region0: #{tpu_custom_call.1}
  #allocation0 [shape = 'u32[]', space=smem, size = 0x4, offset = 0x4, fixed_abs, tag = 'smem constant byte address 0x4 - core index']
  #allocation1 [shape = 'u32[144,128]{1,0:T(1,128)}', space=vmem, size = 0x12000, scoped, tag = 'internal scratch']
  %s0 = inlined_call_operand.vmem [shape: bf16[2,6,72,4], index: 0, kind: input, shape index: {}]
  %s1 = inlined_call_operand.vmem [shape: bf16[9,4,128], index: 1, kind: input, shape index: {}]
  %s2 = inlined_call_operand.vmem [shape: f32[1,128], index: 2, kind: input, shape index: {}]
  %s3 = inlined_call_operand.hbm [shape: bf16[2,64,128], index: 3, kind: output, shape index: {}]
  %s4 = sld [smem:[#allocation0]]
  $region45: #{tpu_custom_call.1} parent=0
    _
  %s6 = ssub.s32 1, %s4
  %s7 = scalar_select 0, %s6, %s4
  $region1: #{tpu_custom_call.1} parent=0
    #allocation2 [shape = 'u8[32768]{0}', space=vmem, size = 0x8000, scoped, tag = 'output window, operand 0']
    #allocation3 [shape = 's32[2]{0}', space=sflag, size = 0x8, scoped, tag = 'scoped memory for tpu_custom_call.1']
    %8 = vsyncpa [#allocation3], 0
    %s9 = scalar_lea.sflag [#allocation3], 1
    %10 = vsyncpa %s9, 0
    loop: start=0, step=1, limit=4
    $region2: #{tpu_custom_call.1} parent=1 // loop_pre_header
      _
    $region3: #{tpu_custom_call.1} parent=1 // loop_header
      %s12 = sphi 0, %s16
      %p13 = scmp.ge.s32.totalorder %s12, 4
      %s19 = sphi 0, %s38
      %s20 = sphi 0, %s34
      %s21 = sphi 0, %s30
      %s22 = sphi 0, %s19
      %s23 = sphi 0, %s20
      %s24 = sphi 0, %s21
      %s25 = sphi 0, %s22
      %s26 = sphi 0, %s23
      %s27 = sphi 0, %s24
      %s41 = sphi 0, %s43
      %s44 = sphi 0, %s41
      %s45 = sphi 0, %s44
      %s61 = sphi 0, %s45
      %s67 = sphi 0, %s69
      %s70 = sphi 0, %s67
      %s71 = sphi 0, %s70
      %s87 = sphi 0, %s71
      %s93 = sphi 0, %s95
      %s96 = sphi 0, %s93
      %s97 = sphi 0, %s96
      %s113 = sphi 0, %s97
      %s123 = sphi 0, %s125
      %s126 = sphi 0, %s123
      %s127 = sphi 0, %s126
      %s143 = sphi 0, %s127
    $region4: #{tpu_custom_call.1} parent=1 // loop_header_branch
      %15 = sbr.rel (%p13) target = $region8
    $region5: #{tpu_custom_call.1} parent=1 // loop_body
      %s17 = ssub.s32 %s12, 1
      %s18 = ssub.s32 %s12, 2
      %s28 = sadd.s32 1, %s21
      %p29 = scmp.ge.s32.totalorder %s28, 1
      %s30 = scalar_select %p29, 0, %s28
      %s31 = sadd.s32 1, %s20
      %s32 = scalar_select %p29, %s31, %s20
      %p33 = scmp.ge.s32.totalorder %s32, 1
      %s34 = scalar_select %p33, 0, %s32
      %s35 = sadd.s32 1, %s19
      %s36 = scalar_select %p33, %s35, %s19
      %p37 = scmp.ge.s32.totalorder %s36, 2
      %s38 = scalar_select %p37, 0, %s36
      %s39 = ssub.s32 %s19, %s38
      %p40 = scmp.eq.s32.totalorder %s39, 0
      %s42 = sadd.s32 %s41, 1
      %s43 = scalar_select %p40, %s41, %s42
      %p46 = pneg %p40
      %p47 = scmp.eq.s32.totalorder %s12, 1
      %p48 = por %p46, %p47
      %p49 = scmp.ne.s32.totalorder %s41, %s44
      %p50 = scmp.eq.s32.totalorder %s12, 0
      %p51 = por %p49, %p50
      %p52 = scmp.ne.s32.totalorder %s41, %s44
      %p53 = scmp.eq.s32.totalorder %s17, 1
      %p54 = por %p52, %p53
      %p55 = scmp.ne.s32.totalorder %s44, %s45
      %p56 = scmp.eq.s32.totalorder %s17, 0
      %p57 = por %p55, %p56
      %p58 = scmp.ne.s32.totalorder %s44, %s45
      %p59 = scmp.eq.s32.totalorder %s18, 1
      %p60 = por %p58, %p59
      %p62 = scmp.ne.s32.totalorder %s45, %s61
      %p63 = scmp.eq.s32.totalorder %s18, 0
      %p64 = por %p62, %p63
      %s65 = ssub.s32 %s21, %s30
      %p66 = scmp.eq.s32.totalorder %s65, 0
      %s68 = sadd.s32 %s67, 1
      %s69 = scalar_select %p66, %s67, %s68
      %p72 = pneg %p66
      %p73 = scmp.eq.s32.totalorder %s12, 1
      %p74 = por %p72, %p73
      %p75 = scmp.ne.s32.totalorder %s67, %s70
      %p76 = scmp.eq.s32.totalorder %s12, 0
      %p77 = por %p75, %p76
      %p78 = scmp.ne.s32.totalorder %s67, %s70
      %p79 = scmp.eq.s32.totalorder %s17, 1
      %p80 = por %p78, %p79
      %p81 = scmp.ne.s32.totalorder %s70, %s71
      %p82 = scmp.eq.s32.totalorder %s17, 0
      %p83 = por %p81, %p82
      %p84 = scmp.ne.s32.totalorder %s70, %s71
      %p85 = scmp.eq.s32.totalorder %s18, 1
      %p86 = por %p84, %p85
      %p88 = scmp.ne.s32.totalorder %s71, %s87
      %p89 = scmp.eq.s32.totalorder %s18, 0
      %p90 = por %p88, %p89
      %s91 = ssub.s32 %s21, %s30
      %p92 = scmp.eq.s32.totalorder %s91, 0
      %s94 = sadd.s32 %s93, 1
      %s95 = scalar_select %p92, %s93, %s94
      %p98 = pneg %p92
      %p99 = scmp.eq.s32.totalorder %s12, 1
      %p100 = por %p98, %p99
      %p101 = scmp.ne.s32.totalorder %s93, %s96
      %p102 = scmp.eq.s32.totalorder %s12, 0
      %p103 = por %p101, %p102
      %p104 = scmp.ne.s32.totalorder %s93, %s96
      %p105 = scmp.eq.s32.totalorder %s17, 1
      %p106 = por %p104, %p105
      %p107 = scmp.ne.s32.totalorder %s96, %s97
      %p108 = scmp.eq.s32.totalorder %s17, 0
      %p109 = por %p107, %p108
      %p110 = scmp.ne.s32.totalorder %s96, %s97
      %p111 = scmp.eq.s32.totalorder %s18, 1
      %p112 = por %p110, %p111
      %p114 = scmp.ne.s32.totalorder %s97, %s113
      %p115 = scmp.eq.s32.totalorder %s18, 0
      %p116 = por %p114, %p115
      %s117 = ssub.s32 %s19, %s38
      %s118 = ssub.s32 %s20, %s34
      %s119 = sor.u32 %s117, %s118
      %s120 = ssub.s32 %s21, %s30
      %s121 = sor.u32 %s119, %s120
      %p122 = scmp.eq.s32.totalorder %s121, 0
      %s124 = sadd.s32 %s123, 1
      %s125 = scalar_select %p122, %s123, %s124
      %p128 = pneg %p122
      %p129 = scmp.eq.s32.totalorder %s12, 1
      %p130 = por %p128, %p129
      %p131 = scmp.ne.s32.totalorder %s123, %s126
      %p132 = scmp.eq.s32.totalorder %s12, 0
      %p133 = por %p131, %p132
      %p134 = scmp.ne.s32.totalorder %s123, %s126
      %p135 = scmp.eq.s32.totalorder %s17, 1
      %p136 = por %p134, %p135
      %p137 = scmp.ne.s32.totalorder %s126, %s127
      %p138 = scmp.eq.s32.totalorder %s17, 0
      %p139 = por %p137, %p138
      %p140 = scmp.ne.s32.totalorder %s126, %s127
      %p141 = scmp.eq.s32.totalorder %s18, 1
      %p142 = por %p140, %p141
      %p144 = scmp.ne.s32.totalorder %s127, %s143
      %p145 = scmp.eq.s32.totalorder %s18, 0
      %p146 = por %p144, %p145
      %p147 = scmp.le.s32.totalorder 1, %s12
      %p148 = scmp.lt.s32.totalorder %s12, 3
      %p149 = pnand %p147, %p148
      %p150 = pneg %p149
      // Predicated region
      $region9: #{tpu_custom_call.1} parent=5 // pred_check
        _
      $region10: #{tpu_custom_call.1} parent=5 // pred_check_branch
        %152 = sbr.rel (%p149) target = $region12
      $region11: #{tpu_custom_call.1} parent=5 // pred_region
        %s153 = ssub.s32 %s12, 1
        // Predicated region
        $region13: #{tpu_custom_call.1} parent=11 // pred_check
          %p154 = pneg %p83
        $region14: #{tpu_custom_call.1} parent=11 // pred_check_branch
          %156 = sbr.rel (%p154) target = $region16
        $region15: #{tpu_custom_call.1} parent=11 // pred_region
          %p157 = scmp.lt.s32.totalorder %s24, 0
          %s158 = scalar_select %p157, %s24, 0
          %s159 = smul.addr %s158, 2
          %s160 = scalar_lea.vmem %s1, %s159
        $region16: #{tpu_custom_call.1} parent=11 // pred_fallthru
          _
        // Predicated region
        $region17: #{tpu_custom_call.1} parent=11 // pred_check
          %p161 = pneg %p109
        $region18: #{tpu_custom_call.1} parent=11 // pred_check_branch
          %163 = sbr.rel (%p161) target = $region20
        $region19: #{tpu_custom_call.1} parent=11 // pred_region
          %p164 = scmp.lt.s32.totalorder %s24, 0
          %s165 = scalar_select %p164, %s24, 0
          %s166 = scalar_lea.vmem %s2, %s165
        $region20: #{tpu_custom_call.1} parent=11 // pred_fallthru
          _
      $region12: #{tpu_custom_call.1} parent=5 // pred_fallthru
        _
      %p167 = scmp.lt.s32.totalorder %s12, 2
      // Predicated region
      $region21: #{tpu_custom_call.1} parent=5 // pred_check
        %p168 = pneg %p167
      $region22: #{tpu_custom_call.1} parent=5 // pred_check_branch
        %170 = sbr.rel (%p168) target = $region24
      $region23: #{tpu_custom_call.1} parent=5 // pred_region
        // Predicated region
        $region25: #{tpu_custom_call.1} parent=23 // pred_check
          %p171 = pneg %p51
        $region26: #{tpu_custom_call.1} parent=23 // pred_check_branch
          %173 = sbr.rel (%p171) target = $region28
        $region27: #{tpu_custom_call.1} parent=23 // pred_region
          %p174 = scmp.lt.s32.totalorder %s19, 1
          %s175 = scalar_select %p174, %s19, 1
          %s176 = smul.addr %s175, 54
          %s177 = smul.addr %s176, 4
          %s178 = scalar_lea.vmem %s0, %s177
        $region28: #{tpu_custom_call.1} parent=23 // pred_fallthru
          _
      $region24: #{tpu_custom_call.1} parent=5 // pred_fallthru
        _
      %p179 = scmp.le.s32.totalorder 1, %s12
      %p180 = scmp.lt.s32.totalorder %s12, 3
      %p181 = pnand %p179, %p180
      %p182 = pneg %p181
      // Predicated region
      $region29: #{tpu_custom_call.1} parent=5 // pred_check
        _
      $region30: #{tpu_custom_call.1} parent=5 // pred_check_branch
        %184 = sbr.rel (%p181) target = $region32
      $region31: #{tpu_custom_call.1} parent=5 // pred_region
        %s185 = ssub.s32 %s12, 1
        %p186 = scmp.lt.s32.totalorder %s22, 1
        %s187 = scalar_select %p186, %s22, 1
        %s188 = smul.addr %s187, 54
        %s189 = smul.addr %s188, 4
        %s190 = scalar_lea.vmem %s0, %s189
        %p191 = pneg %p57
        %p192 = pneg %p54
        %p193 = scmp.lt.s32.totalorder %s24, 0
        %s194 = scalar_select %p193, %s24, 0
        %s195 = smul.addr %s194, 2
        %s196 = scalar_lea.vmem %s1, %s195
        %p197 = pneg %p83
        %p198 = pneg %p80
        %p199 = scmp.lt.s32.totalorder %s24, 0
        %s200 = scalar_select %p199, %s24, 0
        %s201 = scalar_lea.vmem %s2, %s200
        %p202 = pneg %p109
        %p203 = pneg %p106
        %p204 = pneg %p139
        %p205 = pneg %p136
        %s206 = sand.u32 %s126, 1
        %s207 = scalar_lea.sflag [#allocation3], %s206
        %s208 = sand.u32 %s126, 1
        %s209 = smul.addr %s208, 32
        %s210 = scalar_lea.vmem [#allocation2], %s209
        %p211 = scmp.lt.s32.totalorder %s22, 1
        %s212 = scalar_select %p211, %s22, 1
        %s213 = smul.addr %s212, 54
        %s214 = smul.addr %s213, 4
        %s215 = scalar_lea.vmem %s0, %s214
        %p216 = scmp.lt.s32.totalorder %s24, 0
        %s217 = scalar_select %p216, %s24, 0
        %s218 = smul.addr %s217, 2
        %s219 = scalar_lea.vmem %s1, %s218
        %p220 = scmp.lt.s32.totalorder %s24, 0
        %s221 = scalar_select %p220, %s24, 0
        %s222 = scalar_lea.vmem %s2, %s221
        %s223 = smul.u32 8, %s23
        %v225 = vld [vmem:[%s215] sm:$0xf]
        %v226 = vld [vmem:[%s215 + $0x4] sm:$0xf]
        %v227 = vld [vmem:[%s215 + $0x8] sm:$0xf]
        %v228 = vld [vmem:[%s215 + $0xc] sm:$0xf]
        %v229 = vld [vmem:[%s215 + $0x10] sm:$0xf]
        %v230 = vld [vmem:[%s215 + $0x14] sm:$0xf]
        %v231 = vld [vmem:[%s215 + $0x18] sm:$0xf]
        %v232 = vld [vmem:[%s215 + $0x1c] sm:$0xf]
        %v233 = vld [vmem:[%s219] sm:$0x3]
        %s234 = scalar_lea.vmem %s215, 36
        %v235 = vld [vmem:[%s234] sm:$0xf]
        %v236 = vld [vmem:[%s234 + $0x4] sm:$0xf]
        %v237 = vld [vmem:[%s234 + $0x8] sm:$0xf]
        %v238 = vld [vmem:[%s234 + $0xc] sm:$0xf]
        %v239 = vld [vmem:[%s234 + $0x10] sm:$0xf]
        %v240 = vld [vmem:[%s234 + $0x14] sm:$0xf]
        %v241 = vld [vmem:[%s234 + $0x18] sm:$0xf]
        %v242 = vld [vmem:[%s234 + $0x1c] sm:$0xf]
        %s243 = scalar_lea.vmem %s219, 2
        %v244 = vld [vmem:[%s243] sm:$0x3]
        %v253 = vunpack.c.l.b16 %v235
        %v254 = vunpack.c.l.b16 %v236
        %v255 = vunpack.c.l.b16 %v237
        %v256 = vunpack.c.l.b16 %v238
        %v257 = vunpack.c.l.b16 %v239
        %v258 = vunpack.c.l.b16 %v240
        %v259 = vunpack.c.l.b16 %v241
        %v260 = vunpack.c.l.b16 %v242
        %v261 = vpack.c.b16 %v254, %v253
        %v262 = vpack.c.b16 %v256, %v255
        %v263 = vpack.c.b16 %v258, %v257
        %v264 = vpack.c.b16 %v260, %v259
        %vm265 = vcmask 31744
        %v267 = vsel %vm265, %v261, 0
        %v270 = vsel %vm265, %v262, 0
        %v273 = vsel %vm265, %v263, 0
        %v276 = vsel %vm265, %v264, 0
        %vm278 = vcmask 1041408
        %v280 = vsel %vm278, %v244, 0
        %282 = vmatprep.subr.bf16.mxu0 0
        %283 = vmatpush1.bf16.msra.mxu0 0
        %284 = vmatprep.subr.bf16.mxu0 0
        %285 = vmatpush1.bf16.msra.mxu0 0
        %286 = vmatprep.subr.bf16.mxu0 0
        %287 = vmatpush1.bf16.msra.mxu0 0
        %288 = vmatprep.subr.bf16.mxu0 0
        %289 = vmatpush1.bf16.msra.mxu0 0
        %290 = vmatprep.subr.bf16.mxu0 0
        %291 = vmatpush1.bf16.msra.mxu0 0
        %292 = vmatprep.subr.bf16.mxu0 0
        %293 = vmatpush1.bf16.msra.mxu0 0
        %294 = vmatprep.subr.bf16.mxu0 0
        %295 = vmatpush1.bf16.msra.mxu0 0
        %296 = vmatprep.subr.bf16.mxu0 0
        %297 = vmatpush1.bf16.msra.mxu0 %v280
        %298 = vmatprep.subr.bf16.mxu0 0
        %299 = vmatpush2.bf16.msra.mxu0 0
        %300 = vmatprep.subr.bf16.mxu0 0
        %301 = vmatpush2.bf16.msra.mxu0 0
        %302 = vmatprep.subr.bf16.mxu0 0
        %303 = vmatpush2.bf16.msra.mxu0 0
        %304 = vmatprep.subr.bf16.mxu0 0
        %305 = vmatpush2.bf16.msra.mxu0 0
        %306 = vmatprep.subr.bf16.mxu0 0
        %307 = vmatpush2.bf16.msra.mxu0 0
        %308 = vmatprep.subr.bf16.mxu0 0
        %309 = vmatpush2.bf16.msra.mxu0 0
        %310 = vmatprep.subr.bf16.mxu0 0
        %311 = vmatpush2.bf16.msra.mxu0 0
        %312 = vmatprep.subr.bf16.mxu0 0
        %313 = vmatpush2.bf16.msra.mxu0 0
        %314 = vmatprep.mubr.bf16.mxu0 0
        %315 = vmatmul.mubr.bf16.gmra.mxu0 %v267
        %v316 = vpop.f32.mrf.mxu0
        %v317 = vadd.f32 0.0, %v316
        %v318 = vpop.f32.mrf.mxu0
        %v319 = vpop.f32.mrf.mxu0
        %v320 = vadd.f32 0.0, %v319
        %v321 = vpop.f32.mrf.mxu0
        %322 = vmatprep.mubr.bf16.mxu0 0
        %323 = vmatmul.mubr.bf16.gmra.mxu0 %v270
        %v324 = vpop.f32.mrf.mxu0
        %v325 = vadd.f32 0.0, %v324
        %v326 = vpop.f32.mrf.mxu0
        %v327 = vpop.f32.mrf.mxu0
        %v328 = vadd.f32 0.0, %v327
        %v329 = vpop.f32.mrf.mxu0
        %330 = vmatprep.mubr.bf16.mxu0 0
        %331 = vmatmul.mubr.bf16.gmra.mxu0 %v273
        %v332 = vpop.f32.mrf.mxu0
        %v333 = vadd.f32 0.0, %v332
        %v334 = vpop.f32.mrf.mxu0
        %v335 = vpop.f32.mrf.mxu0
        %v336 = vadd.f32 0.0, %v335
        %v337 = vpop.f32.mrf.mxu0
        %338 = vmatprep.mubr.bf16.mxu0 0
        %339 = vmatmul.mubr.bf16.gmra.mxu0 %v276
        %v340 = vpop.f32.mrf.mxu0
        %v341 = vadd.f32 0.0, %v340
        %v342 = vpop.f32.mrf.mxu0
        %v343 = vpop.f32.mrf.mxu0
        %v344 = vadd.f32 0.0, %v343
        %v345 = vpop.f32.mrf.mxu0
        %346 = vdwg.mxu0
        %v355 = vunpack.c.l.b16 %v225
        %v356 = vunpack.c.l.b16 %v226
        %v357 = vunpack.c.l.b16 %v227
        %v358 = vunpack.c.l.b16 %v228
        %v359 = vunpack.c.l.b16 %v229
        %v360 = vunpack.c.l.b16 %v230
        %v361 = vunpack.c.l.b16 %v231
        %v362 = vunpack.c.l.b16 %v232
        %v363 = vpack.c.b16 %v356, %v355
        %v364 = vpack.c.b16 %v358, %v357
        %v365 = vpack.c.b16 %v360, %v359
        %v366 = vpack.c.b16 %v362, %v361
        %v368 = vsel %vm265, %v363, 0
        %v371 = vsel %vm265, %v364, 0
        %v374 = vsel %vm265, %v365, 0
        %v377 = vsel %vm265, %v366, 0
        %v380 = vsel %vm278, %v233, 0
        %382 = vmatprep.subr.bf16.mxu0 0
        %383 = vmatpush1.bf16.msra.mxu0 0
        %384 = vmatprep.subr.bf16.mxu0 0
        %385 = vmatpush1.bf16.msra.mxu0 0
        %386 = vmatprep.subr.bf16.mxu0 0
        %387 = vmatpush1.bf16.msra.mxu0 0
        %388 = vmatprep.subr.bf16.mxu0 0
        %389 = vmatpush1.bf16.msra.mxu0 0
        %390 = vmatprep.subr.bf16.mxu0 0
        %391 = vmatpush1.bf16.msra.mxu0 0
        %392 = vmatprep.subr.bf16.mxu0 0
        %393 = vmatpush1.bf16.msra.mxu0 0
        %394 = vmatprep.subr.bf16.mxu0 0
        %395 = vmatpush1.bf16.msra.mxu0 0
        %396 = vmatprep.subr.bf16.mxu0 0
        %397 = vmatpush1.bf16.msra.mxu0 %v380
        %398 = vmatprep.subr.bf16.mxu0 0
        %399 = vmatpush2.bf16.msra.mxu0 0
        %400 = vmatprep.subr.bf16.mxu0 0
        %401 = vmatpush2.bf16.msra.mxu0 0
        %402 = vmatprep.subr.bf16.mxu0 0
        %403 = vmatpush2.bf16.msra.mxu0 0
        %404 = vmatprep.subr.bf16.mxu0 0
        %405 = vmatpush2.bf16.msra.mxu0 0
        %406 = vmatprep.subr.bf16.mxu0 0
        %407 = vmatpush2.bf16.msra.mxu0 0
        %408 = vmatprep.subr.bf16.mxu0 0
        %409 = vmatpush2.bf16.msra.mxu0 0
        %410 = vmatprep.subr.bf16.mxu0 0
        %411 = vmatpush2.bf16.msra.mxu0 0
        %412 = vmatprep.subr.bf16.mxu0 0
        %413 = vmatpush2.bf16.msra.mxu0 0
        %414 = vmatprep.mubr.bf16.mxu0 0
        %415 = vmatmul.mubr.bf16.gmra.mxu0 %v368
        %v416 = vpop.f32.mrf.mxu0
        %v417 = vadd.f32 %v317, %v416
        %v418 = vpop.f32.mrf.mxu0
        %v419 = vpop.f32.mrf.mxu0
        %v420 = vadd.f32 %v320, %v419
        %v421 = vpop.f32.mrf.mxu0
        %422 = vmatprep.mubr.bf16.mxu0 0
        %423 = vmatmul.mubr.bf16.gmra.mxu0 %v371
        %v424 = vpop.f32.mrf.mxu0
        %v425 = vadd.f32 %v325, %v424
        %v426 = vpop.f32.mrf.mxu0
        %v427 = vpop.f32.mrf.mxu0
        %v428 = vadd.f32 %v328, %v427
        %v429 = vpop.f32.mrf.mxu0
        %430 = vmatprep.mubr.bf16.mxu0 0
        %431 = vmatmul.mubr.bf16.gmra.mxu0 %v374
        %v432 = vpop.f32.mrf.mxu0
        %v433 = vadd.f32 %v333, %v432
        %v434 = vpop.f32.mrf.mxu0
        %v435 = vpop.f32.mrf.mxu0
        %v436 = vadd.f32 %v336, %v435
        %v437 = vpop.f32.mrf.mxu0
        %438 = vmatprep.mubr.bf16.mxu0 0
        %439 = vmatmul.mubr.bf16.gmra.mxu0 %v377
        %v440 = vpop.f32.mrf.mxu0
        %v441 = vadd.f32 %v341, %v440
        %v442 = vpop.f32.mrf.mxu0
        %v443 = vpop.f32.mrf.mxu0
        %v444 = vadd.f32 %v344, %v443
        %v445 = vpop.f32.mrf.mxu0
        %446 = vdwg.mxu0
        %s447 = scalar_lea.vmem %s215, 72
        %v448 = vld [vmem:[%s447] sm:$0xf]
        %v449 = vld [vmem:[%s447 + $0x4] sm:$0xf]
        %v450 = vld [vmem:[%s447 + $0x8] sm:$0xf]
        %v451 = vld [vmem:[%s447 + $0xc] sm:$0xf]
        %v452 = vld [vmem:[%s447 + $0x10] sm:$0xf]
        %v453 = vld [vmem:[%s447 + $0x14] sm:$0xf]
        %v454 = vld [vmem:[%s447 + $0x18] sm:$0xf]
        %v455 = vld [vmem:[%s447 + $0x1c] sm:$0xf]
        %s456 = scalar_lea.vmem %s219, 4
        %v457 = vld [vmem:[%s456] sm:$0x3]
        %v466 = vunpack.c.l.b16 %v448
        %v467 = vunpack.c.l.b16 %v449
        %v468 = vunpack.c.l.b16 %v450
        %v469 = vunpack.c.l.b16 %v451
        %v470 = vunpack.c.l.b16 %v452
        %v471 = vunpack.c.l.b16 %v453
        %v472 = vunpack.c.l.b16 %v454
        %v473 = vunpack.c.l.b16 %v455
        %v474 = vpack.c.b16 %v467, %v466
        %v475 = vpack.c.b16 %v469, %v468
        %v476 = vpack.c.b16 %v471, %v470
        %v477 = vpack.c.b16 %v473, %v472
        %v479 = vsel %vm265, %v474, 0
        %v482 = vsel %vm265, %v475, 0
        %v485 = vsel %vm265, %v476, 0
        %v488 = vsel %vm265, %v477, 0
        %v491 = vsel %vm278, %v457, 0
        %493 = vmatprep.subr.bf16.mxu0 0
        %494 = vmatpush1.bf16.msra.mxu0 0
        %495 = vmatprep.subr.bf16.mxu0 0
        %496 = vmatpush1.bf16.msra.mxu0 0
        %497 = vmatprep.subr.bf16.mxu0 0
        %498 = vmatpush1.bf16.msra.mxu0 0
        %499 = vmatprep.subr.bf16.mxu0 0
        %500 = vmatpush1.bf16.msra.mxu0 0
        %501 = vmatprep.subr.bf16.mxu0 0
        %502 = vmatpush1.bf16.msra.mxu0 0
        %503 = vmatprep.subr.bf16.mxu0 0
        %504 = vmatpush1.bf16.msra.mxu0 0
        %505 = vmatprep.subr.bf16.mxu0 0
        %506 = vmatpush1.bf16.msra.mxu0 0
        %507 = vmatprep.subr.bf16.mxu0 0
        %508 = vmatpush1.bf16.msra.mxu0 %v491
        %509 = vmatprep.subr.bf16.mxu0 0
        %510 = vmatpush2.bf16.msra.mxu0 0
        %511 = vmatprep.subr.bf16.mxu0 0
        %512 = vmatpush2.bf16.msra.mxu0 0
        %513 = vmatprep.subr.bf16.mxu0 0
        %514 = vmatpush2.bf16.msra.mxu0 0
        %515 = vmatprep.subr.bf16.mxu0 0
        %516 = vmatpush2.bf16.msra.mxu0 0
        %517 = vmatprep.subr.bf16.mxu0 0
        %518 = vmatpush2.bf16.msra.mxu0 0
        %519 = vmatprep.subr.bf16.mxu0 0
        %520 = vmatpush2.bf16.msra.mxu0 0
        %521 = vmatprep.subr.bf16.mxu0 0
        %522 = vmatpush2.bf16.msra.mxu0 0
        %523 = vmatprep.subr.bf16.mxu0 0
        %524 = vmatpush2.bf16.msra.mxu0 0
        %525 = vmatprep.mubr.bf16.mxu0 0
        %526 = vmatmul.mubr.bf16.gmra.mxu0 %v479
        %v527 = vpop.f32.mrf.mxu0
        %v528 = vadd.f32 0.0, %v527
        %v529 = vpop.f32.mrf.mxu0
        %v530 = vpop.f32.mrf.mxu0
        %v531 = vadd.f32 0.0, %v530
        %v532 = vpop.f32.mrf.mxu0
        %533 = vmatprep.mubr.bf16.mxu0 0
        %534 = vmatmul.mubr.bf16.gmra.mxu0 %v482
        %v535 = vpop.f32.mrf.mxu0
        %v536 = vadd.f32 0.0, %v535
        %v537 = vpop.f32.mrf.mxu0
        %v538 = vpop.f32.mrf.mxu0
        %v539 = vadd.f32 0.0, %v538
        %v540 = vpop.f32.mrf.mxu0
        %541 = vmatprep.mubr.bf16.mxu0 0
        %542 = vmatmul.mubr.bf16.gmra.mxu0 %v485
        %v543 = vpop.f32.mrf.mxu0
        %v544 = vadd.f32 0.0, %v543
        %v545 = vpop.f32.mrf.mxu0
        %v546 = vpop.f32.mrf.mxu0
        %v547 = vadd.f32 0.0, %v546
        %v548 = vpop.f32.mrf.mxu0
        %549 = vmatprep.mubr.bf16.mxu0 0
        %550 = vmatmul.mubr.bf16.gmra.mxu0 %v488
        %v551 = vpop.f32.mrf.mxu0
        %v552 = vadd.f32 0.0, %v551
        %v553 = vpop.f32.mrf.mxu0
        %v554 = vpop.f32.mrf.mxu0
        %v555 = vadd.f32 0.0, %v554
        %v556 = vpop.f32.mrf.mxu0
        %557 = vdwg.mxu0
        %v558 = vadd.f32 %v417, %v528
        %v559 = vadd.f32 %v420, %v531
        %v560 = vadd.f32 %v425, %v536
        %v561 = vadd.f32 %v428, %v539
        %v562 = vadd.f32 %v433, %v544
        %v563 = vadd.f32 %v436, %v547
        %v564 = vadd.f32 %v441, %v552
        %v565 = vadd.f32 %v444, %v555
        %s566 = scalar_lea.vmem %s215, 108
        %v567 = vld [vmem:[%s566] sm:$0xf]
        %v568 = vld [vmem:[%s566 + $0x4] sm:$0xf]
        %v569 = vld [vmem:[%s566 + $0x8] sm:$0xf]
        %v570 = vld [vmem:[%s566 + $0xc] sm:$0xf]
        %v571 = vld [vmem:[%s566 + $0x10] sm:$0xf]
        %v572 = vld [vmem:[%s566 + $0x14] sm:$0xf]
        %v573 = vld [vmem:[%s566 + $0x18] sm:$0xf]
        %v574 = vld [vmem:[%s566 + $0x1c] sm:$0xf]
        %s575 = scalar_lea.vmem %s219, 6
        %v576 = vld [vmem:[%s575] sm:$0x3]
        %v585 = vunpack.c.l.b16 %v567
        %v586 = vunpack.c.l.b16 %v568
        %v587 = vunpack.c.l.b16 %v569
        %v588 = vunpack.c.l.b16 %v570
        %v589 = vunpack.c.l.b16 %v571
        %v590 = vunpack.c.l.b16 %v572
        %v591 = vunpack.c.l.b16 %v573
        %v592 = vunpack.c.l.b16 %v574
        %v593 = vpack.c.b16 %v586, %v585
        %v594 = vpack.c.b16 %v588, %v587
        %v595 = vpack.c.b16 %v590, %v589
        %v596 = vpack.c.b16 %v592, %v591
        %v598 = vsel %vm265, %v593, 0
        %v601 = vsel %vm265, %v594, 0
        %v604 = vsel %vm265, %v595, 0
        %v607 = vsel %vm265, %v596, 0
        %v610 = vsel %vm278, %v576, 0
        %612 = vmatprep.subr.bf16.mxu0 0
        %613 = vmatpush1.bf16.msra.mxu0 0
        %614 = vmatprep.subr.bf16.mxu0 0
        %615 = vmatpush1.bf16.msra.mxu0 0
        %616 = vmatprep.subr.bf16.mxu0 0
        %617 = vmatpush1.bf16.msra.mxu0 0
        %618 = vmatprep.subr.bf16.mxu0 0
        %619 = vmatpush1.bf16.msra.mxu0 0
        %620 = vmatprep.subr.bf16.mxu0 0
        %621 = vmatpush1.bf16.msra.mxu0 0
        %622 = vmatprep.subr.bf16.mxu0 0
        %623 = vmatpush1.bf16.msra.mxu0 0
        %624 = vmatprep.subr.bf16.mxu0 0
        %625 = vmatpush1.bf16.msra.mxu0 0
        %626 = vmatprep.subr.bf16.mxu0 0
        %627 = vmatpush1.bf16.msra.mxu0 %v610
        %628 = vmatprep.subr.bf16.mxu0 0
        %629 = vmatpush2.bf16.msra.mxu0 0
        %630 = vmatprep.subr.bf16.mxu0 0
        %631 = vmatpush2.bf16.msra.mxu0 0
        %632 = vmatprep.subr.bf16.mxu0 0
        %633 = vmatpush2.bf16.msra.mxu0 0
        %634 = vmatprep.subr.bf16.mxu0 0
        %635 = vmatpush2.bf16.msra.mxu0 0
        %636 = vmatprep.subr.bf16.mxu0 0
        %637 = vmatpush2.bf16.msra.mxu0 0
        %638 = vmatprep.subr.bf16.mxu0 0
        %639 = vmatpush2.bf16.msra.mxu0 0
        %640 = vmatprep.subr.bf16.mxu0 0
        %641 = vmatpush2.bf16.msra.mxu0 0
        %642 = vmatprep.subr.bf16.mxu0 0
        %643 = vmatpush2.bf16.msra.mxu0 0
        %644 = vmatprep.mubr.bf16.mxu0 0
        %645 = vmatmul.mubr.bf16.gmra.mxu0 %v598
        %v646 = vpop.f32.mrf.mxu0
        %v647 = vadd.f32 0.0, %v646
        %v648 = vpop.f32.mrf.mxu0
        %v649 = vpop.f32.mrf.mxu0
        %v650 = vadd.f32 0.0, %v649
        %v651 = vpop.f32.mrf.mxu0
        %652 = vmatprep.mubr.bf16.mxu0 0
        %653 = vmatmul.mubr.bf16.gmra.mxu0 %v601
        %v654 = vpop.f32.mrf.mxu0
        %v655 = vadd.f32 0.0, %v654
        %v656 = vpop.f32.mrf.mxu0
        %v657 = vpop.f32.mrf.mxu0
        %v658 = vadd.f32 0.0, %v657
        %v659 = vpop.f32.mrf.mxu0
        %660 = vmatprep.mubr.bf16.mxu0 0
        %661 = vmatmul.mubr.bf16.gmra.mxu0 %v604
        %v662 = vpop.f32.mrf.mxu0
        %v663 = vadd.f32 0.0, %v662
        %v664 = vpop.f32.mrf.mxu0
        %v665 = vpop.f32.mrf.mxu0
        %v666 = vadd.f32 0.0, %v665
        %v667 = vpop.f32.mrf.mxu0
        %668 = vmatprep.mubr.bf16.mxu0 0
        %669 = vmatmul.mubr.bf16.gmra.mxu0 %v607
        %v670 = vpop.f32.mrf.mxu0
        %v671 = vadd.f32 0.0, %v670
        %v672 = vpop.f32.mrf.mxu0
        %v673 = vpop.f32.mrf.mxu0
        %v674 = vadd.f32 0.0, %v673
        %v675 = vpop.f32.mrf.mxu0
        %676 = vdwg.mxu0
        %v677 = vadd.f32 %v558, %v647
        %v678 = vadd.f32 %v559, %v650
        %v679 = vadd.f32 %v560, %v655
        %v680 = vadd.f32 %v561, %v658
        %v681 = vadd.f32 %v562, %v663
        %v682 = vadd.f32 %v563, %v666
        %v683 = vadd.f32 %v564, %v671
        %v684 = vadd.f32 %v565, %v674
        %s685 = scalar_lea.vmem %s215, 144
        %v686 = vld [vmem:[%s685] sm:$0xf]
        %v687 = vld [vmem:[%s685 + $0x4] sm:$0xf]
        %v688 = vld [vmem:[%s685 + $0x8] sm:$0xf]
        %v689 = vld [vmem:[%s685 + $0xc] sm:$0xf]
        %v690 = vld [vmem:[%s685 + $0x10] sm:$0xf]
        %v691 = vld [vmem:[%s685 + $0x14] sm:$0xf]
        %v692 = vld [vmem:[%s685 + $0x18] sm:$0xf]
        %v693 = vld [vmem:[%s685 + $0x1c] sm:$0xf]
        %s694 = scalar_lea.vmem %s219, 8
        %v695 = vld [vmem:[%s694] sm:$0x3]
        %v704 = vunpack.c.l.b16 %v686
        %v705 = vunpack.c.l.b16 %v687
        %v706 = vunpack.c.l.b16 %v688
        %v707 = vunpack.c.l.b16 %v689
        %v708 = vunpack.c.l.b16 %v690
        %v709 = vunpack.c.l.b16 %v691
        %v710 = vunpack.c.l.b16 %v692
        %v711 = vunpack.c.l.b16 %v693
        %v712 = vpack.c.b16 %v705, %v704
        %v713 = vpack.c.b16 %v707, %v706
        %v714 = vpack.c.b16 %v709, %v708
        %v715 = vpack.c.b16 %v711, %v710
        %v717 = vsel %vm265, %v712, 0
        %v720 = vsel %vm265, %v713, 0
        %v723 = vsel %vm265, %v714, 0
        %v726 = vsel %vm265, %v715, 0
        %v729 = vsel %vm278, %v695, 0
        %731 = vmatprep.subr.bf16.mxu0 0
        %732 = vmatpush1.bf16.msra.mxu0 0
        %733 = vmatprep.subr.bf16.mxu0 0
        %734 = vmatpush1.bf16.msra.mxu0 0
        %735 = vmatprep.subr.bf16.mxu0 0
        %736 = vmatpush1.bf16.msra.mxu0 0
        %737 = vmatprep.subr.bf16.mxu0 0
        %738 = vmatpush1.bf16.msra.mxu0 0
        %739 = vmatprep.subr.bf16.mxu0 0
        %740 = vmatpush1.bf16.msra.mxu0 0
        %741 = vmatprep.subr.bf16.mxu0 0
        %742 = vmatpush1.bf16.msra.mxu0 0
        %743 = vmatprep.subr.bf16.mxu0 0
        %744 = vmatpush1.bf16.msra.mxu0 0
        %745 = vmatprep.subr.bf16.mxu0 0
        %746 = vmatpush1.bf16.msra.mxu0 %v729
        %747 = vmatprep.subr.bf16.mxu0 0
        %748 = vmatpush2.bf16.msra.mxu0 0
        %749 = vmatprep.subr.bf16.mxu0 0
        %750 = vmatpush2.bf16.msra.mxu0 0
        %751 = vmatprep.subr.bf16.mxu0 0
        %752 = vmatpush2.bf16.msra.mxu0 0
        %753 = vmatprep.subr.bf16.mxu0 0
        %754 = vmatpush2.bf16.msra.mxu0 0
        %755 = vmatprep.subr.bf16.mxu0 0
        %756 = vmatpush2.bf16.msra.mxu0 0
        %757 = vmatprep.subr.bf16.mxu0 0
        %758 = vmatpush2.bf16.msra.mxu0 0
        %759 = vmatprep.subr.bf16.mxu0 0
        %760 = vmatpush2.bf16.msra.mxu0 0
        %761 = vmatprep.subr.bf16.mxu0 0
        %762 = vmatpush2.bf16.msra.mxu0 0
        %763 = vmatprep.mubr.bf16.mxu0 0
        %764 = vmatmul.mubr.bf16.gmra.mxu0 %v717
        %v765 = vpop.f32.mrf.mxu0
        %v766 = vadd.f32 0.0, %v765
        %v767 = vpop.f32.mrf.mxu0
        %v768 = vpop.f32.mrf.mxu0
        %v769 = vadd.f32 0.0, %v768
        %v770 = vpop.f32.mrf.mxu0
        %771 = vmatprep.mubr.bf16.mxu0 0
        %772 = vmatmul.mubr.bf16.gmra.mxu0 %v720
        %v773 = vpop.f32.mrf.mxu0
        %v774 = vadd.f32 0.0, %v773
        %v775 = vpop.f32.mrf.mxu0
        %v776 = vpop.f32.mrf.mxu0
        %v777 = vadd.f32 0.0, %v776
        %v778 = vpop.f32.mrf.mxu0
        %779 = vmatprep.mubr.bf16.mxu0 0
        %780 = vmatmul.mubr.bf16.gmra.mxu0 %v723
        %v781 = vpop.f32.mrf.mxu0
        %v782 = vadd.f32 0.0, %v781
        %v783 = vpop.f32.mrf.mxu0
        %v784 = vpop.f32.mrf.mxu0
        %v785 = vadd.f32 0.0, %v784
        %v786 = vpop.f32.mrf.mxu0
        %787 = vmatprep.mubr.bf16.mxu0 0
        %788 = vmatmul.mubr.bf16.gmra.mxu0 %v726
        %v789 = vpop.f32.mrf.mxu0
        %v790 = vadd.f32 0.0, %v789
        %v791 = vpop.f32.mrf.mxu0
        %v792 = vpop.f32.mrf.mxu0
        %v793 = vadd.f32 0.0, %v792
        %v794 = vpop.f32.mrf.mxu0
        %795 = vdwg.mxu0
        %v796 = vadd.f32 %v677, %v766
        %v797 = vadd.f32 %v678, %v769
        %v798 = vadd.f32 %v679, %v774
        %v799 = vadd.f32 %v680, %v777
        %v800 = vadd.f32 %v681, %v782
        %v801 = vadd.f32 %v682, %v785
        %v802 = vadd.f32 %v683, %v790
        %v803 = vadd.f32 %v684, %v793
        %s804 = scalar_lea.vmem %s215, 180
        %v805 = vld [vmem:[%s804] sm:$0xf]
        %v806 = vld [vmem:[%s804 + $0x4] sm:$0xf]
        %v807 = vld [vmem:[%s804 + $0x8] sm:$0xf]
        %v808 = vld [vmem:[%s804 + $0xc] sm:$0xf]
        %v809 = vld [vmem:[%s804 + $0x10] sm:$0xf]
        %v810 = vld [vmem:[%s804 + $0x14] sm:$0xf]
        %v811 = vld [vmem:[%s804 + $0x18] sm:$0xf]
        %v812 = vld [vmem:[%s804 + $0x1c] sm:$0xf]
        %s813 = scalar_lea.vmem %s219, 10
        %v814 = vld [vmem:[%s813] sm:$0x3]
        %v823 = vunpack.c.l.b16 %v805
        %v824 = vunpack.c.l.b16 %v806
        %v825 = vunpack.c.l.b16 %v807
        %v826 = vunpack.c.l.b16 %v808
        %v827 = vunpack.c.l.b16 %v809
        %v828 = vunpack.c.l.b16 %v810
        %v829 = vunpack.c.l.b16 %v811
        %v830 = vunpack.c.l.b16 %v812
        %v831 = vpack.c.b16 %v824, %v823
        %v832 = vpack.c.b16 %v826, %v825
        %v833 = vpack.c.b16 %v828, %v827
        %v834 = vpack.c.b16 %v830, %v829
        %v836 = vsel %vm265, %v831, 0
        %v839 = vsel %vm265, %v832, 0
        %v842 = vsel %vm265, %v833, 0
        %v845 = vsel %vm265, %v834, 0
        %v848 = vsel %vm278, %v814, 0
        %850 = vmatprep.subr.bf16.mxu0 0
        %851 = vmatpush1.bf16.msra.mxu0 0
        %852 = vmatprep.subr.bf16.mxu0 0
        %853 = vmatpush1.bf16.msra.mxu0 0
        %854 = vmatprep.subr.bf16.mxu0 0
        %855 = vmatpush1.bf16.msra.mxu0 0
        %856 = vmatprep.subr.bf16.mxu0 0
        %857 = vmatpush1.bf16.msra.mxu0 0
        %858 = vmatprep.subr.bf16.mxu0 0
        %859 = vmatpush1.bf16.msra.mxu0 0
        %860 = vmatprep.subr.bf16.mxu0 0
        %861 = vmatpush1.bf16.msra.mxu0 0
        %862 = vmatprep.subr.bf16.mxu0 0
        %863 = vmatpush1.bf16.msra.mxu0 0
        %864 = vmatprep.subr.bf16.mxu0 0
        %865 = vmatpush1.bf16.msra.mxu0 %v848
        %866 = vmatprep.subr.bf16.mxu0 0
        %867 = vmatpush2.bf16.msra.mxu0 0
        %868 = vmatprep.subr.bf16.mxu0 0
        %869 = vmatpush2.bf16.msra.mxu0 0
        %870 = vmatprep.subr.bf16.mxu0 0
        %871 = vmatpush2.bf16.msra.mxu0 0
        %872 = vmatprep.subr.bf16.mxu0 0
        %873 = vmatpush2.bf16.msra.mxu0 0
        %874 = vmatprep.subr.bf16.mxu0 0
        %875 = vmatpush2.bf16.msra.mxu0 0
        %876 = vmatprep.subr.bf16.mxu0 0
        %877 = vmatpush2.bf16.msra.mxu0 0
        %878 = vmatprep.subr.bf16.mxu0 0
        %879 = vmatpush2.bf16.msra.mxu0 0
        %880 = vmatprep.subr.bf16.mxu0 0
        %881 = vmatpush2.bf16.msra.mxu0 0
        %882 = vmatprep.mubr.bf16.mxu0 0
        %883 = vmatmul.mubr.bf16.gmra.mxu0 %v836
        %v884 = vpop.f32.mrf.mxu0
        %v885 = vadd.f32 0.0, %v884
        %v886 = vpop.f32.mrf.mxu0
        %v887 = vpop.f32.mrf.mxu0
        %v888 = vadd.f32 0.0, %v887
        %v889 = vpop.f32.mrf.mxu0
        %890 = vmatprep.mubr.bf16.mxu0 0
        %891 = vmatmul.mubr.bf16.gmra.mxu0 %v839
        %v892 = vpop.f32.mrf.mxu0
        %v893 = vadd.f32 0.0, %v892
        %v894 = vpop.f32.mrf.mxu0
        %v895 = vpop.f32.mrf.mxu0
        %v896 = vadd.f32 0.0, %v895
        %v897 = vpop.f32.mrf.mxu0
        %898 = vmatprep.mubr.bf16.mxu0 0
        %899 = vmatmul.mubr.bf16.gmra.mxu0 %v842
        %v900 = vpop.f32.mrf.mxu0
        %v901 = vadd.f32 0.0, %v900
        %v902 = vpop.f32.mrf.mxu0
        %v903 = vpop.f32.mrf.mxu0
        %v904 = vadd.f32 0.0, %v903
        %v905 = vpop.f32.mrf.mxu0
        %906 = vmatprep.mubr.bf16.mxu0 0
        %907 = vmatmul.mubr.bf16.gmra.mxu0 %v845
        %v908 = vpop.f32.mrf.mxu0
        %v909 = vadd.f32 0.0, %v908
        %v910 = vpop.f32.mrf.mxu0
        %v911 = vpop.f32.mrf.mxu0
        %v912 = vadd.f32 0.0, %v911
        %v913 = vpop.f32.mrf.mxu0
        %914 = vdwg.mxu0
        %v915 = vadd.f32 %v796, %v885
        %v916 = vadd.f32 %v797, %v888
        %v917 = vadd.f32 %v798, %v893
        %v918 = vadd.f32 %v799, %v896
        %v919 = vadd.f32 %v800, %v901
        %v920 = vadd.f32 %v801, %v904
        %v921 = vadd.f32 %v802, %v909
        %v922 = vadd.f32 %v803, %v912
        %v923 = vld [vmem:[%s215 + $0x4] sm:$0xf]
        %v924 = vld [vmem:[%s215 + $0x8] sm:$0xf]
        %v925 = vld [vmem:[%s215 + $0xc] sm:$0xf]
        %v926 = vld [vmem:[%s215 + $0x10] sm:$0xf]
        %v927 = vld [vmem:[%s215 + $0x14] sm:$0xf]
        %v928 = vld [vmem:[%s215 + $0x18] sm:$0xf]
        %v929 = vld [vmem:[%s215 + $0x1c] sm:$0xf]
        %v930 = vld [vmem:[%s215 + $0x20] sm:$0xf]
        %s931 = scalar_lea.vmem %s219, 12
        %v932 = vld [vmem:[%s931] sm:$0x3]
        %v941 = vunpack.c.l.b16 %v923
        %v942 = vunpack.c.l.b16 %v924
        %v943 = vunpack.c.l.b16 %v925
        %v944 = vunpack.c.l.b16 %v926
        %v945 = vunpack.c.l.b16 %v927
        %v946 = vunpack.c.l.b16 %v928
        %v947 = vunpack.c.l.b16 %v929
        %v948 = vunpack.c.l.b16 %v930
        %v949 = vpack.c.b16 %v942, %v941
        %v950 = vpack.c.b16 %v944, %v943
        %v951 = vpack.c.b16 %v946, %v945
        %v952 = vpack.c.b16 %v948, %v947
        %v954 = vsel %vm265, %v949, 0
        %v957 = vsel %vm265, %v950, 0
        %v960 = vsel %vm265, %v951, 0
        %v963 = vsel %vm265, %v952, 0
        %v966 = vsel %vm278, %v932, 0
        %968 = vmatprep.subr.bf16.mxu0 0
        %969 = vmatpush1.bf16.msra.mxu0 0
        %970 = vmatprep.subr.bf16.mxu0 0
        %971 = vmatpush1.bf16.msra.mxu0 0
        %972 = vmatprep.subr.bf16.mxu0 0
        %973 = vmatpush1.bf16.msra.mxu0 0
        %974 = vmatprep.subr.bf16.mxu0 0
        %975 = vmatpush1.bf16.msra.mxu0 0
        %976 = vmatprep.subr.bf16.mxu0 0
        %977 = vmatpush1.bf16.msra.mxu0 0
        %978 = vmatprep.subr.bf16.mxu0 0
        %979 = vmatpush1.bf16.msra.mxu0 0
        %980 = vmatprep.subr.bf16.mxu0 0
        %981 = vmatpush1.bf16.msra.mxu0 0
        %982 = vmatprep.subr.bf16.mxu0 0
        %983 = vmatpush1.bf16.msra.mxu0 %v966
        %984 = vmatprep.subr.bf16.mxu0 0
        %985 = vmatpush2.bf16.msra.mxu0 0
        %986 = vmatprep.subr.bf16.mxu0 0
        %987 = vmatpush2.bf16.msra.mxu0 0
        %988 = vmatprep.subr.bf16.mxu0 0
        %989 = vmatpush2.bf16.msra.mxu0 0
        %990 = vmatprep.subr.bf16.mxu0 0
        %991 = vmatpush2.bf16.msra.mxu0 0
        %992 = vmatprep.subr.bf16.mxu0 0
        %993 = vmatpush2.bf16.msra.mxu0 0
        %994 = vmatprep.subr.bf16.mxu0 0
        %995 = vmatpush2.bf16.msra.mxu0 0
        %996 = vmatprep.subr.bf16.mxu0 0
        %997 = vmatpush2.bf16.msra.mxu0 0
        %998 = vmatprep.subr.bf16.mxu0 0
        %999 = vmatpush2.bf16.msra.mxu0 0
        %1000 = vmatprep.mubr.bf16.mxu0 0
        %1001 = vmatmul.mubr.bf16.gmra.mxu0 %v954
        %v1002 = vpop.f32.mrf.mxu0
        %v1003 = vadd.f32 0.0, %v1002
        %v1004 = vpop.f32.mrf.mxu0
        %v1005 = vpop.f32.mrf.mxu0
        %v1006 = vadd.f32 0.0, %v1005
        %v1007 = vpop.f32.mrf.mxu0
        %1008 = vmatprep.mubr.bf16.mxu0 0
        %1009 = vmatmul.mubr.bf16.gmra.mxu0 %v957
        %v1010 = vpop.f32.mrf.mxu0
        %v1011 = vadd.f32 0.0, %v1010
        %v1012 = vpop.f32.mrf.mxu0
        %v1013 = vpop.f32.mrf.mxu0
        %v1014 = vadd.f32 0.0, %v1013
        %v1015 = vpop.f32.mrf.mxu0
        %1016 = vmatprep.mubr.bf16.mxu0 0
        %1017 = vmatmul.mubr.bf16.gmra.mxu0 %v960
        %v1018 = vpop.f32.mrf.mxu0
        %v1019 = vadd.f32 0.0, %v1018
        %v1020 = vpop.f32.mrf.mxu0
        %v1021 = vpop.f32.mrf.mxu0
        %v1022 = vadd.f32 0.0, %v1021
        %v1023 = vpop.f32.mrf.mxu0
        %1024 = vmatprep.mubr.bf16.mxu0 0
        %1025 = vmatmul.mubr.bf16.gmra.mxu0 %v963
        %v1026 = vpop.f32.mrf.mxu0
        %v1027 = vadd.f32 0.0, %v1026
        %v1028 = vpop.f32.mrf.mxu0
        %v1029 = vpop.f32.mrf.mxu0
        %v1030 = vadd.f32 0.0, %v1029
        %v1031 = vpop.f32.mrf.mxu0
        %1032 = vdwg.mxu0
        %v1033 = vadd.f32 %v915, %v1003
        %v1034 = vadd.f32 %v916, %v1006
        %v1035 = vadd.f32 %v917, %v1011
        %v1036 = vadd.f32 %v918, %v1014
        %v1037 = vadd.f32 %v919, %v1019
        %v1038 = vadd.f32 %v920, %v1022
        %v1039 = vadd.f32 %v921, %v1027
        %v1040 = vadd.f32 %v922, %v1030
        %v1041 = vld [vmem:[%s234 + $0x4] sm:$0xf]
        %v1042 = vld [vmem:[%s234 + $0x8] sm:$0xf]
        %v1043 = vld [vmem:[%s234 + $0xc] sm:$0xf]
        %v1044 = vld [vmem:[%s234 + $0x10] sm:$0xf]
        %v1045 = vld [vmem:[%s234 + $0x14] sm:$0xf]
        %v1046 = vld [vmem:[%s234 + $0x18] sm:$0xf]
        %v1047 = vld [vmem:[%s234 + $0x1c] sm:$0xf]
        %v1048 = vld [vmem:[%s234 + $0x20] sm:$0xf]
        %s1049 = scalar_lea.vmem %s219, 14
        %v1050 = vld [vmem:[%s1049] sm:$0x3]
        %v1059 = vunpack.c.l.b16 %v1041
        %v1060 = vunpack.c.l.b16 %v1042
        %v1061 = vunpack.c.l.b16 %v1043
        %v1062 = vunpack.c.l.b16 %v1044
        %v1063 = vunpack.c.l.b16 %v1045
        %v1064 = vunpack.c.l.b16 %v1046
        %v1065 = vunpack.c.l.b16 %v1047
        %v1066 = vunpack.c.l.b16 %v1048
        %v1067 = vpack.c.b16 %v1060, %v1059
        %v1068 = vpack.c.b16 %v1062, %v1061
        %v1069 = vpack.c.b16 %v1064, %v1063
        %v1070 = vpack.c.b16 %v1066, %v1065
        %v1072 = vsel %vm265, %v1067, 0
        %v1075 = vsel %vm265, %v1068, 0
        %v1078 = vsel %vm265, %v1069, 0
        %v1081 = vsel %vm265, %v1070, 0
        %v1084 = vsel %vm278, %v1050, 0
        %1086 = vmatprep.subr.bf16.mxu0 0
        %1087 = vmatpush1.bf16.msra.mxu0 0
        %1088 = vmatprep.subr.bf16.mxu0 0
        %1089 = vmatpush1.bf16.msra.mxu0 0
        %1090 = vmatprep.subr.bf16.mxu0 0
        %1091 = vmatpush1.bf16.msra.mxu0 0
        %1092 = vmatprep.subr.bf16.mxu0 0
        %1093 = vmatpush1.bf16.msra.mxu0 0
        %1094 = vmatprep.subr.bf16.mxu0 0
        %1095 = vmatpush1.bf16.msra.mxu0 0
        %1096 = vmatprep.subr.bf16.mxu0 0
        %1097 = vmatpush1.bf16.msra.mxu0 0
        %1098 = vmatprep.subr.bf16.mxu0 0
        %1099 = vmatpush1.bf16.msra.mxu0 0
        %1100 = vmatprep.subr.bf16.mxu0 0
        %1101 = vmatpush1.bf16.msra.mxu0 %v1084
        %1102 = vmatprep.subr.bf16.mxu0 0
        %1103 = vmatpush2.bf16.msra.mxu0 0
        %1104 = vmatprep.subr.bf16.mxu0 0
        %1105 = vmatpush2.bf16.msra.mxu0 0
        %1106 = vmatprep.subr.bf16.mxu0 0
        %1107 = vmatpush2.bf16.msra.mxu0 0
        %1108 = vmatprep.subr.bf16.mxu0 0
        %1109 = vmatpush2.bf16.msra.mxu0 0
        %1110 = vmatprep.subr.bf16.mxu0 0
        %1111 = vmatpush2.bf16.msra.mxu0 0
        %1112 = vmatprep.subr.bf16.mxu0 0
        %1113 = vmatpush2.bf16.msra.mxu0 0
        %1114 = vmatprep.subr.bf16.mxu0 0
        %1115 = vmatpush2.bf16.msra.mxu0 0
        %1116 = vmatprep.subr.bf16.mxu0 0
        %1117 = vmatpush2.bf16.msra.mxu0 0
        %1118 = vmatprep.mubr.bf16.mxu0 0
        %1119 = vmatmul.mubr.bf16.gmra.mxu0 %v1072
        %v1120 = vpop.f32.mrf.mxu0
        %v1121 = vadd.f32 0.0, %v1120
        %v1122 = vpop.f32.mrf.mxu0
        %v1123 = vpop.f32.mrf.mxu0
        %v1124 = vadd.f32 0.0, %v1123
        %v1125 = vpop.f32.mrf.mxu0
        %1126 = vmatprep.mubr.bf16.mxu0 0
        %1127 = vmatmul.mubr.bf16.gmra.mxu0 %v1075
        %v1128 = vpop.f32.mrf.mxu0
        %v1129 = vadd.f32 0.0, %v1128
        %v1130 = vpop.f32.mrf.mxu0
        %v1131 = vpop.f32.mrf.mxu0
        %v1132 = vadd.f32 0.0, %v1131
        %v1133 = vpop.f32.mrf.mxu0
        %1134 = vmatprep.mubr.bf16.mxu0 0
        %1135 = vmatmul.mubr.bf16.gmra.mxu0 %v1078
        %v1136 = vpop.f32.mrf.mxu0
        %v1137 = vadd.f32 0.0, %v1136
        %v1138 = vpop.f32.mrf.mxu0
        %v1139 = vpop.f32.mrf.mxu0
        %v1140 = vadd.f32 0.0, %v1139
        %v1141 = vpop.f32.mrf.mxu0
        %1142 = vmatprep.mubr.bf16.mxu0 0
        %1143 = vmatmul.mubr.bf16.gmra.mxu0 %v1081
        %v1144 = vpop.f32.mrf.mxu0
        %v1145 = vadd.f32 0.0, %v1144
        %v1146 = vpop.f32.mrf.mxu0
        %v1147 = vpop.f32.mrf.mxu0
        %v1148 = vadd.f32 0.0, %v1147
        %v1149 = vpop.f32.mrf.mxu0
        %1150 = vdwg.mxu0
        %v1151 = vadd.f32 %v1033, %v1121
        %v1152 = vadd.f32 %v1034, %v1124
        %v1153 = vadd.f32 %v1035, %v1129
        %v1154 = vadd.f32 %v1036, %v1132
        %v1155 = vadd.f32 %v1037, %v1137
        %v1156 = vadd.f32 %v1038, %v1140
        %v1157 = vadd.f32 %v1039, %v1145
        %v1158 = vadd.f32 %v1040, %v1148
        %v1159 = vld [vmem:[%s447 + $0x4] sm:$0xf]
        %v1160 = vld [vmem:[%s447 + $0x8] sm:$0xf]
        %v1161 = vld [vmem:[%s447 + $0xc] sm:$0xf]
        %v1162 = vld [vmem:[%s447 + $0x10] sm:$0xf]
        %v1163 = vld [vmem:[%s447 + $0x14] sm:$0xf]
        %v1164 = vld [vmem:[%s447 + $0x18] sm:$0xf]
        %v1165 = vld [vmem:[%s447 + $0x1c] sm:$0xf]
        %v1166 = vld [vmem:[%s447 + $0x20] sm:$0xf]
        %s1167 = scalar_lea.vmem %s219, 16
        %v1168 = vld [vmem:[%s1167] sm:$0x3]
        %v1177 = vunpack.c.l.b16 %v1159
        %v1178 = vunpack.c.l.b16 %v1160
        %v1179 = vunpack.c.l.b16 %v1161
        %v1180 = vunpack.c.l.b16 %v1162
        %v1181 = vunpack.c.l.b16 %v1163
        %v1182 = vunpack.c.l.b16 %v1164
        %v1183 = vunpack.c.l.b16 %v1165
        %v1184 = vunpack.c.l.b16 %v1166
        %v1185 = vpack.c.b16 %v1178, %v1177
        %v1186 = vpack.c.b16 %v1180, %v1179
        %v1187 = vpack.c.b16 %v1182, %v1181
        %v1188 = vpack.c.b16 %v1184, %v1183
        %v1190 = vsel %vm265, %v1185, 0
        %v1193 = vsel %vm265, %v1186, 0
        %v1196 = vsel %vm265, %v1187, 0
        %v1199 = vsel %vm265, %v1188, 0
        %v1202 = vsel %vm278, %v1168, 0
        %1204 = vmatprep.subr.bf16.mxu0 0
        %1205 = vmatpush1.bf16.msra.mxu0 0
        %1206 = vmatprep.subr.bf16.mxu0 0
        %1207 = vmatpush1.bf16.msra.mxu0 0
        %1208 = vmatprep.subr.bf16.mxu0 0
        %1209 = vmatpush1.bf16.msra.mxu0 0
        %1210 = vmatprep.subr.bf16.mxu0 0
        %1211 = vmatpush1.bf16.msra.mxu0 0
        %1212 = vmatprep.subr.bf16.mxu0 0
        %1213 = vmatpush1.bf16.msra.mxu0 0
        %1214 = vmatprep.subr.bf16.mxu0 0
        %1215 = vmatpush1.bf16.msra.mxu0 0
        %1216 = vmatprep.subr.bf16.mxu0 0
        %1217 = vmatpush1.bf16.msra.mxu0 0
        %1218 = vmatprep.subr.bf16.mxu0 0
        %1219 = vmatpush1.bf16.msra.mxu0 %v1202
        %1220 = vmatprep.subr.bf16.mxu0 0
        %1221 = vmatpush2.bf16.msra.mxu0 0
        %1222 = vmatprep.subr.bf16.mxu0 0
        %1223 = vmatpush2.bf16.msra.mxu0 0
        %1224 = vmatprep.subr.bf16.mxu0 0
        %1225 = vmatpush2.bf16.msra.mxu0 0
        %1226 = vmatprep.subr.bf16.mxu0 0
        %1227 = vmatpush2.bf16.msra.mxu0 0
        %1228 = vmatprep.subr.bf16.mxu0 0
        %1229 = vmatpush2.bf16.msra.mxu0 0
        %1230 = vmatprep.subr.bf16.mxu0 0
        %1231 = vmatpush2.bf16.msra.mxu0 0
        %1232 = vmatprep.subr.bf16.mxu0 0
        %1233 = vmatpush2.bf16.msra.mxu0 0
        %1234 = vmatprep.subr.bf16.mxu0 0
        %1235 = vmatpush2.bf16.msra.mxu0 0
        %1236 = vmatprep.mubr.bf16.mxu0 0
        %1237 = vmatmul.mubr.bf16.gmra.mxu0 %v1190
        %v1238 = vpop.f32.mrf.mxu0
        %v1239 = vadd.f32 0.0, %v1238
        %v1240 = vpop.f32.mrf.mxu0
        %v1241 = vpop.f32.mrf.mxu0
        %v1242 = vadd.f32 0.0, %v1241
        %v1243 = vpop.f32.mrf.mxu0
        %1244 = vmatprep.mubr.bf16.mxu0 0
        %1245 = vmatmul.mubr.bf16.gmra.mxu0 %v1193
        %v1246 = vpop.f32.mrf.mxu0
        %v1247 = vadd.f32 0.0, %v1246
        %v1248 = vpop.f32.mrf.mxu0
        %v1249 = vpop.f32.mrf.mxu0
        %v1250 = vadd.f32 0.0, %v1249
        %v1251 = vpop.f32.mrf.mxu0
        %1252 = vmatprep.mubr.bf16.mxu0 0
        %1253 = vmatmul.mubr.bf16.gmra.mxu0 %v1196
        %v1254 = vpop.f32.mrf.mxu0
        %v1255 = vadd.f32 0.0, %v1254
        %v1256 = vpop.f32.mrf.mxu0
        %v1257 = vpop.f32.mrf.mxu0
        %v1258 = vadd.f32 0.0, %v1257
        %v1259 = vpop.f32.mrf.mxu0
        %1260 = vmatprep.mubr.bf16.mxu0 0
        %1261 = vmatmul.mubr.bf16.gmra.mxu0 %v1199
        %v1262 = vpop.f32.mrf.mxu0
        %v1263 = vadd.f32 0.0, %v1262
        %v1264 = vpop.f32.mrf.mxu0
        %v1265 = vpop.f32.mrf.mxu0
        %v1266 = vadd.f32 0.0, %v1265
        %v1267 = vpop.f32.mrf.mxu0
        %1268 = vdwg.mxu0
        %v1269 = vadd.f32 %v1151, %v1239
        %v1270 = vadd.f32 %v1152, %v1242
        %v1271 = vadd.f32 %v1153, %v1247
        %v1272 = vadd.f32 %v1154, %v1250
        %v1273 = vadd.f32 %v1155, %v1255
        %v1274 = vadd.f32 %v1156, %v1258
        %v1275 = vadd.f32 %v1157, %v1263
        %v1276 = vadd.f32 %v1158, %v1266
        %v1277 = vld [vmem:[%s222] sm:$0x1]
        %v1279 = vlaneseq
        %v1280 = vshrl.u32 %v1279, 7
        %v1281 = vsub.s32 0, %v1280
        %v1282 = vrot.slane %v1277, %v1281
        %v1284 = vadd.f32 %v1269, %v1282
        %v1285 = vadd.f32 %v1270, %v1282
        %v1286 = vadd.f32 %v1271, %v1282
        %v1287 = vadd.f32 %v1272, %v1282
        %v1288 = vadd.f32 %v1273, %v1282
        %v1289 = vadd.f32 %v1274, %v1282
        %v1290 = vadd.f32 %v1275, %v1282
        %v1291 = vadd.f32 %v1276, %v1282
        %v1292 = vmax.f32 %v1284, 0.0
        %v1293 = vmax.f32 %v1285, 0.0
        %v1294 = vmax.f32 %v1286, 0.0
        %v1295 = vmax.f32 %v1287, 0.0
        %v1296 = vmax.f32 %v1288, 0.0
        %v1297 = vmax.f32 %v1289, 0.0
        %v1298 = vmax.f32 %v1290, 0.0
        %v1299 = vmax.f32 %v1291, 0.0
        %v1300 = vpack.c.bf16 %v1293, %v1292
        %v1301 = vpack.c.bf16 %v1295, %v1294
        %v1302 = vpack.c.bf16 %v1297, %v1296
        %v1303 = vpack.c.bf16 %v1299, %v1298
        %v1308 = vunpack.c.l.b16 %v1300
        %v1309 = vunpack.c.h.b16 %v1300
        %v1310 = vunpack.c.l.b16 %v1301
        %v1311 = vunpack.c.h.b16 %v1301
        %v1312 = vunpack.c.l.b16 %v1302
        %v1313 = vunpack.c.h.b16 %v1302
        %v1314 = vunpack.c.l.b16 %v1303
        %v1315 = vunpack.c.h.b16 %v1303
        %v1316 = vpack.c.b16 %v1308, %v1308
        %v1317 = vpack.c.b16 %v1309, %v1309
        %v1318 = vpack.c.b16 %v1310, %v1310
        %v1319 = vpack.c.b16 %v1311, %v1311
        %v1320 = vpack.c.b16 %v1312, %v1312
        %v1321 = vpack.c.b16 %v1313, %v1313
        %v1322 = vpack.c.b16 %v1314, %v1314
        %v1323 = vpack.c.b16 %v1315, %v1315
        %1332 = vst [vmem:[%s210] sm:$0xf] %v1316
        %1333 = vst [vmem:[%s210 + $0x4] sm:$0xf] %v1317
        %1334 = vst [vmem:[%s210 + $0x8] sm:$0xf] %v1318
        %1335 = vst [vmem:[%s210 + $0xc] sm:$0xf] %v1319
        %1336 = vst [vmem:[%s210 + $0x10] sm:$0xf] %v1320
        %1337 = vst [vmem:[%s210 + $0x14] sm:$0xf] %v1321
        %1338 = vst [vmem:[%s210 + $0x18] sm:$0xf] %v1322
        %1339 = vst [vmem:[%s210 + $0x1c] sm:$0xf] %v1323
        %s1340 = sand.u32 %s126, 1
        %s1341 = scalar_lea.sflag [#allocation3], %s1340
        %s1342 = sand.u32 %s126, 1
        %s1343 = smul.addr %s1342, 32
        %s1344 = scalar_lea.vmem [#allocation2], %s1343
        // Predicated region
        $region33: #{tpu_custom_call.1} parent=31 // pred_check
          %p1345 = pneg %p136
        $region34: #{tpu_custom_call.1} parent=31 // pred_check_branch
          %1347 = sbr.rel (%p1345) target = $region36
        $region35: #{tpu_custom_call.1} parent=31 // pred_region
          %s1348 = smul.u32 8, %s23
          %s1350 = ssub.s32 512, 512
          %1351 = vsyncadd %s1341, %s1350
          %s1352 = sadd.s32 %s24, %s1348
          %s1353 = smul.addr %s22, 8
          %s1354 = sadd.s32 %s1352, %s1353
          %s1355 = smul.addr %s1354, 64
          %s1356 = scalar_lea.hbm %s3, %s1355
          %s1357 = sshll.u32 %s1344, 4
          %s1358 = int_to_ptr.vmem [resolvable:$true] %s1357
          %1363 = dma.vmem_to_hbm [thread:$0]  %s1358, 512, %s1356, %s1341, 64, 64, 4
        $region36: #{tpu_custom_call.1} parent=31 // pred_fallthru
          _
      $region32: #{tpu_custom_call.1} parent=5 // pred_fallthru
        _
      %p1364 = scmp.le.s32.totalorder 2, %s12
      // Predicated region
      $region37: #{tpu_custom_call.1} parent=5 // pred_check
        %p1365 = pneg %p1364
      $region38: #{tpu_custom_call.1} parent=5 // pred_check_branch
        %1367 = sbr.rel (%p1365) target = $region40
      $region39: #{tpu_custom_call.1} parent=5 // pred_region
        %s1368 = ssub.s32 %s12, 2
        // Predicated region
        $region41: #{tpu_custom_call.1} parent=39 // pred_check
          %p1369 = pneg %p142
        $region42: #{tpu_custom_call.1} parent=39 // pred_check_branch
          %1371 = sbr.rel (%p1369) target = $region44
        $region43: #{tpu_custom_call.1} parent=39 // pred_region
          %s1372 = sand.u32 %s127, 1
          %s1373 = scalar_lea.sflag [#allocation3], %s1372
          %s1374 = sand.u32 %s127, 1
          %s1375 = smul.addr %s1374, 32
          %s1376 = scalar_lea.vmem [#allocation2], %s1375
          %1377 = dma.done %s1373, 512
        $region44: #{tpu_custom_call.1} parent=39 // pred_fallthru
          _
      $region40: #{tpu_custom_call.1} parent=5 // pred_fallthru
        _
    $region6: #{tpu_custom_call.1} parent=1 // loop_footer
      %s16 = sadd.s32 1, %s12
    $region7: #{tpu_custom_call.1} parent=1 // loop_footer_branch
      %11 = sbr.rel target = $region3
    $region8: #{tpu_custom_call.1} parent=1 // loop_exit
      _
    %1378 = vsyncpa [#allocation3], 1
    %s1379 = scalar_lea.sflag [#allocation3], 1
    %1380 = vsyncpa %s1379, 1

</llo_original>
